<compile_context>
chip_gen: v7x
topology: tpu7x:2x2x1
jax: 0.10.0
libtpu: 0.0.40
codegen_flags: <defaults>
</compile_context>

<pallas_src>
import math

import jax
import jax.numpy as jnp
from jax.experimental import pallas as pl
from jax.experimental.pallas import tpu as pltpu


def _layernorm(v, w, b, eps=1e-5):
    mu = jnp.mean(v, axis=-1, keepdims=True)
    var = jnp.mean((v - mu) ** 2, axis=-1, keepdims=True)
    return (v - mu) * jax.lax.rsqrt(var + eps) * w + b


def _gelu_exact(x):
    # PyTorch nn.GELU() default = exact (erf-based) GELU
    return 0.5 * x * (1.0 + jax.lax.erf(x * (1.0 / math.sqrt(2.0))))


def _block_kernel(x_ref, wq_ref, wk_ref, wvo_ref, bq_ref, bk_ref, bvo_ref,
                  wfc_ref, wpr_ref, vecs_ref, o_ref):
    T, C = x_ref.shape
    H = wq_ref.shape[0]

    x = x_ref[...].astype(jnp.float32)                       # (T, C)

    vecs = vecs_ref[...]                                      # (8, 4C) f32, packed
    ln1w, ln1b = vecs[0, :C], vecs[1, :C]
    ln2w, ln2b = vecs[2, :C], vecs[3, :C]
    b_o, b_pr = vecs[4, :C], vecs[6, :C]
    b_fc = vecs[5, :]                                         # (4C,)

    # ---- attention branch ----
    h1 = _layernorm(x, ln1w, ln1b)                            # (T, C) f32
    h1b = jnp.broadcast_to(h1.astype(jnp.bfloat16)[None], (H, T, C))

    dn_proj = (((2,), (1,)), ((0,), (0,)))                    # contract C, batch H
    # 1/sqrt(hd) is folded into wq/bq in the wrapper.
    q = jax.lax.dot_general(h1b, wq_ref[...], dn_proj,
                            preferred_element_type=jnp.float32) + bq_ref[...]   # (H,T,hd)
    k = jax.lax.dot_general(h1b, wk_ref[...], dn_proj,
                            preferred_element_type=jnp.float32) + bk_ref[...]   # (H,T,hd)
    vo = jax.lax.dot_general(h1b, wvo_ref[...], dn_proj,
                             preferred_element_type=jnp.float32) + bvo_ref[...]  # (H,T,C)

    dn_qk = (((2,), (2,)), ((0,), (0,)))                      # contract hd, batch H
    s = jax.lax.dot_general(q.astype(jnp.bfloat16), k.astype(jnp.bfloat16),
                            dn_qk, preferred_element_type=jnp.float32)          # (H,T,T)

    # causal mask generated in-kernel (grid step = one batch element)
    row = jax.lax.broadcasted_iota(jnp.int32, (T, T), 0)
    col = jax.lax.broadcasted_iota(jnp.int32, (T, T), 1)
    s = jnp.where((col <= row)[None], s, -1e30)
    s = s - jnp.max(s, axis=-1, keepdims=True)
    p = jnp.exp(s)
    p = p * pl.reciprocal(jnp.sum(p, axis=-1, keepdims=True), approx=True)

    dn_pv = (((2,), (1,)), ((0,), (0,)))                      # contract key axis, batch H
    y = jax.lax.dot_general(p.astype(jnp.bfloat16), vo.astype(jnp.bfloat16),
                            dn_pv, preferred_element_type=jnp.float32)          # (H,T,C)
    x = x + jnp.sum(y, axis=0) + b_o                          # residual 1

    # ---- MLP branch ----
    h2 = _layernorm(x, ln2w, ln2b)
    f = jnp.dot(h2.astype(jnp.bfloat16), wfc_ref[...],
                preferred_element_type=jnp.float32) + b_fc                      # (T, 4C)
    f = _gelu_exact(f)
    f = jnp.dot(f.astype(jnp.bfloat16), wpr_ref[...],
                preferred_element_type=jnp.float32) + b_pr                      # (T, C)
    x = x + f                                                 # residual 2

    o_ref[...] = x.astype(o_ref.dtype)


def prepare_params(params, n_head):
    """One-time wrapper-side prep: per-head weight split, W_v@W_o folding, bf16 cast,
    and packing of all small LN/bias vectors into one lane-dense (8, 4C) array."""
    C = params["w_qkv"].shape[0]
    H = n_head
    hd = C // H
    scale = 1.0 / math.sqrt(hd)
    hi = jax.lax.Precision.HIGHEST

    w_qkv = params["w_qkv"]
    b_qkv = params["b_qkv"].reshape(-1)
    w_q, w_k, w_v = w_qkv[:, :C], w_qkv[:, C:2 * C], w_qkv[:, 2 * C:]
    b_q, b_k, b_v = b_qkv[:C], b_qkv[C:2 * C], b_qkv[2 * C:]
    w_o = params["w_o"]
    b_o = params["b_o"].reshape(-1)

    to_heads = lambda w: w.reshape(C, H, hd).transpose(1, 0, 2)   # (H, C, hd)
    wo_h = w_o.reshape(H, hd, C)                                   # (H, hd, C)

    wq_h = (to_heads(w_q) * scale).astype(jnp.bfloat16)            # scale folded in
    wk_h = to_heads(w_k).astype(jnp.bfloat16)
    wvo_h = jnp.einsum("hcd,hdk->hck", to_heads(w_v), wo_h,
                       precision=hi).astype(jnp.bfloat16)          # (H, C, C)

    bq_h = (b_q * scale).reshape(H, 1, hd).astype(jnp.float32)
    bk_h = b_k.reshape(H, 1, hd).astype(jnp.float32)
    bvo_h = jnp.einsum("hd,hdk->hk", b_v.reshape(H, hd), wo_h,
                       precision=hi).reshape(H, 1, C).astype(jnp.float32)

    vecs = jnp.zeros((8, 4 * C), jnp.float32)
    vecs = vecs.at[0, :C].set(params["ln1_w"].reshape(-1))
    vecs = vecs.at[1, :C].set(params["ln1_b"].reshape(-1))
    vecs = vecs.at[2, :C].set(params["ln2_w"].reshape(-1))
    vecs = vecs.at[3, :C].set(params["ln2_b"].reshape(-1))
    vecs = vecs.at[4, :C].set(b_o)
    vecs = vecs.at[5, :].set(params["b_fc"].reshape(-1))
    vecs = vecs.at[6, :C].set(params["b_pr"].reshape(-1))

    return {
        "wq_h": wq_h, "wk_h": wk_h, "wvo_h": wvo_h,
        "bq_h": bq_h, "bk_h": bk_h, "bvo_h": bvo_h,
        "w_fc": params["w_fc"].astype(jnp.bfloat16),
        "w_pr": params["w_pr"].astype(jnp.bfloat16),
        "vecs": vecs,
    }


def gpt_block(x, prep):
    """x: (B, T, C) float32. prep: output of prepare_params."""
    B, T, C = x.shape
    H = prep["wq_h"].shape[0]
    hd = C // H
    x2d = x.reshape(B * T, C)           # free XLA reshape outside the kernel

    out2d = pl.pallas_call(
        _block_kernel,
        out_shape=jax.ShapeDtypeStruct((B * T, C), x.dtype),
        grid=(B,),
        in_specs=[
            pl.BlockSpec((T, C), lambda b: (b, 0)),              # x rows of batch b
            pl.BlockSpec((H, C, hd), lambda b: (0, 0, 0)),       # wq (per-head)
            pl.BlockSpec((H, C, hd), lambda b: (0, 0, 0)),       # wk (per-head)
            pl.BlockSpec((H, C, C), lambda b: (0, 0, 0)),        # wvo = wv @ wo (per-head)
            pl.BlockSpec((H, 1, hd), lambda b: (0, 0, 0)),       # bq
            pl.BlockSpec((H, 1, hd), lambda b: (0, 0, 0)),       # bk
            pl.BlockSpec((H, 1, C), lambda b: (0, 0, 0)),        # bvo
            pl.BlockSpec((C, 4 * C), lambda b: (0, 0)),          # w_fc
            pl.BlockSpec((4 * C, C), lambda b: (0, 0)),          # w_pr
            pl.BlockSpec((8, 4 * C), lambda b: (0, 0)),          # packed LN/bias vectors
        ],
        out_specs=pl.BlockSpec((T, C), lambda b: (b, 0)),
        compiler_params=pltpu.CompilerParams(
            dimension_semantics=("parallel",)),                   # 2 TCs on v7x
    )(x2d, prep["wq_h"], prep["wk_h"], prep["wvo_h"],
      prep["bq_h"], prep["bk_h"], prep["bvo_h"],
      prep["w_fc"], prep["w_pr"], prep["vecs"])
    return out2d.reshape(B, T, C)


def init_params(key, n_embd):
    """Deterministic synthetic parameters (shapes match the PyTorch module)."""
    ks = jax.random.split(key, 8)
    s = 0.02
    C = n_embd
    return {
        "ln1_w": jnp.ones((1, C), jnp.float32),
        "ln1_b": jnp.zeros((1, C), jnp.float32),
        "ln2_w": jnp.ones((1, C), jnp.float32),
        "ln2_b": jnp.zeros((1, C), jnp.float32),
        # attention
        "w_qkv": s * jax.random.normal(ks[0], (C, 3 * C), jnp.float32),
        "b_qkv": s * jax.random.normal(ks[1], (1, 3 * C), jnp.float32),
        "w_o":   s * jax.random.normal(ks[2], (C, C), jnp.float32),
        "b_o":   s * jax.random.normal(ks[3], (1, C), jnp.float32),
        # MLP
        "w_fc":  s * jax.random.normal(ks[4], (C, 4 * C), jnp.float32),
        "b_fc":  s * jax.random.normal(ks[5], (1, 4 * C), jnp.float32),
        "w_pr":  s * jax.random.normal(ks[6], (4 * C, C), jnp.float32),
        "b_pr":  s * jax.random.normal(ks[7], (1, C), jnp.float32),
    }


def reference_block(x, p, n_head):
    """Pure-JAX (f32) reference with identical semantics (for verification)."""
    B, T, C = x.shape
    hd = C // n_head

    def ln(v, w, b):
        mu = jnp.mean(v, -1, keepdims=True)
        var = jnp.mean((v - mu) ** 2, -1, keepdims=True)
        return (v - mu) / jnp.sqrt(var + 1e-5) * w[0] + b[0]

    h = ln(x, p["ln1_w"], p["ln1_b"])
    qkv = h @ p["w_qkv"] + p["b_qkv"][0]
    q, k, v = jnp.split(qkv, 3, axis=-1)
    q = q.reshape(B, T, n_head, hd).transpose(0, 2, 1, 3)
    k = k.reshape(B, T, n_head, hd).transpose(0, 2, 1, 3)
    v = v.reshape(B, T, n_head, hd).transpose(0, 2, 1, 3)
    att = jnp.einsum("bhtd,bhsd->bhts", q, k) / math.sqrt(hd)
    mask = jnp.tril(jnp.ones((T, T), bool))
    att = jnp.where(mask[None, None], att, -jnp.inf)
    att = jax.nn.softmax(att, axis=-1)
    y = jnp.einsum("bhts,bhsd->bhtd", att, v).transpose(0, 2, 1, 3).reshape(B, T, C)
    y = y @ p["w_o"] + p["b_o"][0]
    x = x + y
    h2 = ln(x, p["ln2_w"], p["ln2_b"])
    f = h2 @ p["w_fc"] + p["b_fc"][0]
    f = 0.5 * f * (1.0 + jax.lax.erf(f / math.sqrt(2.0)))
    f = f @ p["w_pr"] + p["b_pr"][0]
    return x + f


if __name__ == "__main__":
    # config: n_embd=32, n_head=4, block_size=8, bias=True, dropout=0.0 (eval)
    B, T, C, n_head = 2, 8, 32, 4

    key = jax.random.PRNGKey(0)
    kx, kp = jax.random.split(key)
    x = jax.random.normal(kx, (B, T, C), jnp.float32)
    params = init_params(kp, C)
    prep = prepare_params(params, n_head)      # one-time weight prep (bf16, per-head, folding)

    out = gpt_block(x, prep)
    out = jax.block_until_ready(out)

    ref = reference_block(x, params, n_head)
    assert out.shape == (B, T, C)
    err = float(jnp.max(jnp.abs(out - ref)))
    # kernel runs matmuls with bf16 operands (f32 accumulation) -> small tolerance
    assert jnp.allclose(out, ref, atol=3e-3, rtol=3e-3), f"max err {err}"
    print("KERNEL_OK")
</pallas_src>

<mosaic_0001>
module attributes {stable_mosaic.version = 11 : i64} {
  func.func @_block_kernel(%arg0: i32, %arg1: memref<8x32xf32, #tpu.memory_space<vmem>>, %arg2: memref<4x32x8xbf16, #tpu.memory_space<vmem>>, %arg3: memref<4x32x8xbf16, #tpu.memory_space<vmem>>, %arg4: memref<4x32x32xbf16, #tpu.memory_space<vmem>>, %arg5: memref<4x1x8xf32, #tpu.memory_space<vmem>>, %arg6: memref<4x1x8xf32, #tpu.memory_space<vmem>>, %arg7: memref<4x1x32xf32, #tpu.memory_space<vmem>>, %arg8: memref<32x128xbf16, #tpu.memory_space<vmem>>, %arg9: memref<128x32xbf16, #tpu.memory_space<vmem>>, %arg10: memref<8x128xf32, #tpu.memory_space<vmem>>, %arg11: memref<8x32xf32, #tpu.memory_space<vmem>>) attributes {dimension_semantics = [#tpu.dimension_semantics<parallel>], iteration_bounds = array<i64: 2>, scalar_prefetch = 0 : i64, scratch_operands = 0 : i64, tpu.core_type = #tpu.core_type<tc>, window_params = [{transform_indices = @transform_0, window_bounds = array<i64: 8, 32>}, {pipeline_mode = #tpu.pipeline_mode<synchronous>, transform_indices = @transform_1, window_bounds = array<i64: 4, 32, 8>}, {pipeline_mode = #tpu.pipeline_mode<synchronous>, transform_indices = @transform_2, window_bounds = array<i64: 4, 32, 8>}, {pipeline_mode = #tpu.pipeline_mode<synchronous>, transform_indices = @transform_3, window_bounds = array<i64: 4, 32, 32>}, {pipeline_mode = #tpu.pipeline_mode<synchronous>, transform_indices = @transform_4, window_bounds = array<i64: 4, 1, 8>}, {pipeline_mode = #tpu.pipeline_mode<synchronous>, transform_indices = @transform_5, window_bounds = array<i64: 4, 1, 8>}, {pipeline_mode = #tpu.pipeline_mode<synchronous>, transform_indices = @transform_6, window_bounds = array<i64: 4, 1, 32>}, {pipeline_mode = #tpu.pipeline_mode<synchronous>, transform_indices = @transform_7, window_bounds = array<i64: 32, 128>}, {pipeline_mode = #tpu.pipeline_mode<synchronous>, transform_indices = @transform_8, window_bounds = array<i64: 128, 32>}, {pipeline_mode = #tpu.pipeline_mode<synchronous>, transform_indices = @transform_9, window_bounds = array<i64: 8, 128>}, {transform_indices = @transform_10, window_bounds = array<i64: 8, 32>}]} {
    %c0 = arith.constant 0 : index
    %c0_0 = arith.constant 0 : index
    %0 = vector.load %arg1[%c0, %c0_0] : memref<8x32xf32, #tpu.memory_space<vmem>>, vector<8x32xf32>
    %c0_1 = arith.constant 0 : index
    %c0_2 = arith.constant 0 : index
    %1 = vector.load %arg10[%c0_1, %c0_2] : memref<8x128xf32, #tpu.memory_space<vmem>>, vector<8x128xf32>
    %2 = vector.extract_strided_slice %1 {offsets = [0, 0], sizes = [1, 32], strides = [1, 1]} : vector<8x128xf32> to vector<1x32xf32>
    %3 = vector.shape_cast %2 : vector<1x32xf32> to vector<32xf32>
    %4 = vector.extract_strided_slice %1 {offsets = [1, 0], sizes = [1, 32], strides = [1, 1]} : vector<8x128xf32> to vector<1x32xf32>
    %5 = vector.shape_cast %4 : vector<1x32xf32> to vector<32xf32>
    %6 = vector.extract_strided_slice %1 {offsets = [2, 0], sizes = [1, 32], strides = [1, 1]} : vector<8x128xf32> to vector<1x32xf32>
    %7 = vector.shape_cast %6 : vector<1x32xf32> to vector<32xf32>
    %8 = vector.extract_strided_slice %1 {offsets = [3, 0], sizes = [1, 32], strides = [1, 1]} : vector<8x128xf32> to vector<1x32xf32>
    %9 = vector.shape_cast %8 : vector<1x32xf32> to vector<32xf32>
    %10 = vector.extract_strided_slice %1 {offsets = [4, 0], sizes = [1, 32], strides = [1, 1]} : vector<8x128xf32> to vector<1x32xf32>
    %11 = vector.shape_cast %10 : vector<1x32xf32> to vector<32xf32>
    %12 = vector.extract_strided_slice %1 {offsets = [6, 0], sizes = [1, 32], strides = [1, 1]} : vector<8x128xf32> to vector<1x32xf32>
    %13 = vector.shape_cast %12 : vector<1x32xf32> to vector<32xf32>
    %14 = vector.extract_strided_slice %1 {offsets = [5, 0], sizes = [1, 128], strides = [1, 1]} : vector<8x128xf32> to vector<1x128xf32>
    %15 = vector.shape_cast %14 : vector<1x128xf32> to vector<128xf32>
    %cst = arith.constant dense<0.000000e+00> : vector<8xf32>
    %16 = vector.multi_reduction <add>, %0, %cst [1] : vector<8x32xf32> to vector<8xf32>
    %17 = vector.shape_cast %16 : vector<8xf32> to vector<8x1xf32>
    %cst_3 = arith.constant 3.200000e+01 : f32
    %18 = vector.broadcast %cst_3 : f32 to vector<8x1xf32>
    %19 = arith.divf %17, %18 : vector<8x1xf32>
    %20 = vector.broadcast %19 : vector<8x1xf32> to vector<8x32xf32>
    %21 = arith.subf %0, %20 : vector<8x32xf32>
    %22 = arith.mulf %21, %21 : vector<8x32xf32>
    %cst_4 = arith.constant dense<0.000000e+00> : vector<8xf32>
    %23 = vector.multi_reduction <add>, %22, %cst_4 [1] : vector<8x32xf32> to vector<8xf32>
    %24 = vector.shape_cast %23 : vector<8xf32> to vector<8x1xf32>
    %cst_5 = arith.constant 3.200000e+01 : f32
    %25 = vector.broadcast %cst_5 : f32 to vector<8x1xf32>
    %26 = arith.divf %24, %25 : vector<8x1xf32>
    %27 = vector.broadcast %19 : vector<8x1xf32> to vector<8x32xf32>
    %28 = arith.subf %0, %27 : vector<8x32xf32>
    %cst_6 = arith.constant 9.99999974E-6 : f32
    %29 = vector.broadcast %cst_6 : f32 to vector<8x1xf32>
    %30 = arith.addf %26, %29 : vector<8x1xf32>
    %31 = math.rsqrt %30 : vector<8x1xf32>
    %32 = vector.broadcast %31 : vector<8x1xf32> to vector<8x32xf32>
    %33 = arith.mulf %28, %32 : vector<8x32xf32>
    %34 = vector.shape_cast %3 : vector<32xf32> to vector<1x32xf32>
    %35 = vector.broadcast %34 : vector<1x32xf32> to vector<8x32xf32>
    %36 = arith.mulf %33, %35 : vector<8x32xf32>
    %37 = vector.shape_cast %5 : vector<32xf32> to vector<1x32xf32>
    %38 = vector.broadcast %37 : vector<1x32xf32> to vector<8x32xf32>
    %39 = arith.addf %36, %38 : vector<8x32xf32>
    %40 = arith.truncf %39 : vector<8x32xf32> to vector<8x32xbf16>
    %41 = vector.shape_cast %40 : vector<8x32xbf16> to vector<1x8x32xbf16>
    %42 = vector.shape_cast %41 : vector<1x8x32xbf16> to vector<1x8x32xbf16>
    %43 = vector.broadcast %42 : vector<1x8x32xbf16> to vector<4x8x32xbf16>
    %c0_7 = arith.constant 0 : index
    %c0_8 = arith.constant 0 : index
    %c0_9 = arith.constant 0 : index
    %44 = vector.load %arg2[%c0_7, %c0_8, %c0_9] : memref<4x32x8xbf16, #tpu.memory_space<vmem>>, vector<4x32x8xbf16>
    %cst_10 = arith.constant dense<0.000000e+00> : vector<4x8x8xf32>
    %45 = tpu.matmul %43, %44, %cst_10 {dimension_numbers = #tpu.dot_dimension_numbers<[2], [1], [1], [2], [0, 0, 0, 1, 1, 2], [0], [0]>} : vector<4x8x32xbf16>, vector<4x32x8xbf16>, vector<4x8x8xf32> -> vector<4x8x8xf32>
    %c0_11 = arith.constant 0 : index
    %c0_12 = arith.constant 0 : index
    %c0_13 = arith.constant 0 : index
    %46 = vector.load %arg5[%c0_11, %c0_12, %c0_13] : memref<4x1x8xf32, #tpu.memory_space<vmem>>, vector<4x1x8xf32>
    %47 = vector.broadcast %46 : vector<4x1x8xf32> to vector<4x8x8xf32>
    %48 = arith.addf %45, %47 : vector<4x8x8xf32>
    %c0_14 = arith.constant 0 : index
    %c0_15 = arith.constant 0 : index
    %c0_16 = arith.constant 0 : index
    %49 = vector.load %arg3[%c0_14, %c0_15, %c0_16] : memref<4x32x8xbf16, #tpu.memory_space<vmem>>, vector<4x32x8xbf16>
    %cst_17 = arith.constant dense<0.000000e+00> : vector<4x8x8xf32>
    %50 = tpu.matmul %43, %49, %cst_17 {dimension_numbers = #tpu.dot_dimension_numbers<[2], [1], [1], [2], [0, 0, 0, 1, 1, 2], [0], [0]>} : vector<4x8x32xbf16>, vector<4x32x8xbf16>, vector<4x8x8xf32> -> vector<4x8x8xf32>
    %c0_18 = arith.constant 0 : index
    %c0_19 = arith.constant 0 : index
    %c0_20 = arith.constant 0 : index
    %51 = vector.load %arg6[%c0_18, %c0_19, %c0_20] : memref<4x1x8xf32, #tpu.memory_space<vmem>>, vector<4x1x8xf32>
    %52 = vector.broadcast %51 : vector<4x1x8xf32> to vector<4x8x8xf32>
    %53 = arith.addf %50, %52 : vector<4x8x8xf32>
    %c0_21 = arith.constant 0 : index
    %c0_22 = arith.constant 0 : index
    %c0_23 = arith.constant 0 : index
    %54 = vector.load %arg4[%c0_21, %c0_22, %c0_23] : memref<4x32x32xbf16, #tpu.memory_space<vmem>>, vector<4x32x32xbf16>
    %cst_24 = arith.constant dense<0.000000e+00> : vector<4x8x32xf32>
    %55 = tpu.matmul %43, %54, %cst_24 {dimension_numbers = #tpu.dot_dimension_numbers<[2], [1], [1], [2], [0, 0, 0, 1, 1, 2], [0], [0]>} : vector<4x8x32xbf16>, vector<4x32x32xbf16>, vector<4x8x32xf32> -> vector<4x8x32xf32>
    %c0_25 = arith.constant 0 : index
    %c0_26 = arith.constant 0 : index
    %c0_27 = arith.constant 0 : index
    %56 = vector.load %arg7[%c0_25, %c0_26, %c0_27] : memref<4x1x32xf32, #tpu.memory_space<vmem>>, vector<4x1x32xf32>
    %57 = vector.broadcast %56 : vector<4x1x32xf32> to vector<4x8x32xf32>
    %58 = arith.addf %55, %57 : vector<4x8x32xf32>
    %59 = arith.truncf %48 : vector<4x8x8xf32> to vector<4x8x8xbf16>
    %60 = arith.truncf %53 : vector<4x8x8xf32> to vector<4x8x8xbf16>
    %cst_28 = arith.constant dense<0.000000e+00> : vector<4x8x8xf32>
    %61 = tpu.matmul %59, %60, %cst_28 {dimension_numbers = #tpu.dot_dimension_numbers<[2], [2], [1], [1], [0, 0, 0, 1, 1, 1], [0], [0]>} : vector<4x8x8xbf16>, vector<4x8x8xbf16>, vector<4x8x8xf32> -> vector<4x8x8xf32>
    %62 = tpu.iota {dimensions = array<i32: 0>} : vector<8x8xi32>
    %63 = tpu.iota {dimensions = array<i32: 1>} : vector<8x8xi32>
    %64 = arith.cmpi sle, %63, %62 : vector<8x8xi32>
    %65 = vector.shape_cast %64 : vector<8x8xi1> to vector<1x8x8xi1>
    %cst_29 = arith.constant -1.000000e+30 : f32
    %66 = vector.shape_cast %65 : vector<1x8x8xi1> to vector<1x8x8xi1>
    %67 = vector.broadcast %66 : vector<1x8x8xi1> to vector<4x8x8xi1>
    %68 = vector.broadcast %cst_29 : f32 to vector<4x8x8xf32>
    %69 = arith.select %67, %61, %68 : vector<4x8x8xi1>, vector<4x8x8xf32>
    %cst_30 = arith.constant dense<0xFF800000> : vector<4x8xf32>
    %70 = vector.multi_reduction <maximumf>, %69, %cst_30 [2] : vector<4x8x8xf32> to vector<4x8xf32>
    %71 = vector.shape_cast %70 : vector<4x8xf32> to vector<4x8x1xf32>
    %72 = vector.broadcast %71 : vector<4x8x1xf32> to vector<4x8x8xf32>
    %73 = arith.subf %69, %72 : vector<4x8x8xf32>
    %74 = math.exp %73 : vector<4x8x8xf32>
    %cst_31 = arith.constant dense<0.000000e+00> : vector<4x8xf32>
    %75 = vector.multi_reduction <add>, %74, %cst_31 [2] : vector<4x8x8xf32> to vector<4x8xf32>
    %76 = vector.shape_cast %75 : vector<4x8xf32> to vector<4x8x1xf32>
    %77 = tpu.reciprocal %76 {approx = true} : vector<4x8x1xf32> -> vector<4x8x1xf32>
    %78 = vector.broadcast %77 : vector<4x8x1xf32> to vector<4x8x8xf32>
    %79 = arith.mulf %74, %78 : vector<4x8x8xf32>
    %80 = arith.truncf %79 : vector<4x8x8xf32> to vector<4x8x8xbf16>
    %81 = arith.truncf %58 : vector<4x8x32xf32> to vector<4x8x32xbf16>
    %cst_32 = arith.constant dense<0.000000e+00> : vector<4x8x32xf32>
    %82 = tpu.matmul %80, %81, %cst_32 {dimension_numbers = #tpu.dot_dimension_numbers<[2], [1], [1], [2], [0, 0, 0, 1, 1, 2], [0], [0]>} : vector<4x8x8xbf16>, vector<4x8x32xbf16>, vector<4x8x32xf32> -> vector<4x8x32xf32>
    %cst_33 = arith.constant dense<0.000000e+00> : vector<8x32xf32>
    %83 = vector.multi_reduction <add>, %82, %cst_33 [0] : vector<4x8x32xf32> to vector<8x32xf32>
    %84 = arith.addf %0, %83 : vector<8x32xf32>
    %85 = vector.shape_cast %11 : vector<32xf32> to vector<1x32xf32>
    %86 = vector.broadcast %85 : vector<1x32xf32> to vector<8x32xf32>
    %87 = arith.addf %84, %86 : vector<8x32xf32>
    %cst_34 = arith.constant dense<0.000000e+00> : vector<8xf32>
    %88 = vector.multi_reduction <add>, %87, %cst_34 [1] : vector<8x32xf32> to vector<8xf32>
    %89 = vector.shape_cast %88 : vector<8xf32> to vector<8x1xf32>
    %cst_35 = arith.constant 3.200000e+01 : f32
    %90 = vector.broadcast %cst_35 : f32 to vector<8x1xf32>
    %91 = arith.divf %89, %90 : vector<8x1xf32>
    %92 = vector.broadcast %91 : vector<8x1xf32> to vector<8x32xf32>
    %93 = arith.subf %87, %92 : vector<8x32xf32>
    %94 = arith.mulf %93, %93 : vector<8x32xf32>
    %cst_36 = arith.constant dense<0.000000e+00> : vector<8xf32>
    %95 = vector.multi_reduction <add>, %94, %cst_36 [1] : vector<8x32xf32> to vector<8xf32>
    %96 = vector.shape_cast %95 : vector<8xf32> to vector<8x1xf32>
    %cst_37 = arith.constant 3.200000e+01 : f32
    %97 = vector.broadcast %cst_37 : f32 to vector<8x1xf32>
    %98 = arith.divf %96, %97 : vector<8x1xf32>
    %99 = vector.broadcast %91 : vector<8x1xf32> to vector<8x32xf32>
    %100 = arith.subf %87, %99 : vector<8x32xf32>
    %cst_38 = arith.constant 9.99999974E-6 : f32
    %101 = vector.broadcast %cst_38 : f32 to vector<8x1xf32>
    %102 = arith.addf %98, %101 : vector<8x1xf32>
    %103 = math.rsqrt %102 : vector<8x1xf32>
    %104 = vector.broadcast %103 : vector<8x1xf32> to vector<8x32xf32>
    %105 = arith.mulf %100, %104 : vector<8x32xf32>
    %106 = vector.shape_cast %7 : vector<32xf32> to vector<1x32xf32>
    %107 = vector.broadcast %106 : vector<1x32xf32> to vector<8x32xf32>
    %108 = arith.mulf %105, %107 : vector<8x32xf32>
    %109 = vector.shape_cast %9 : vector<32xf32> to vector<1x32xf32>
    %110 = vector.broadcast %109 : vector<1x32xf32> to vector<8x32xf32>
    %111 = arith.addf %108, %110 : vector<8x32xf32>
    %112 = arith.truncf %111 : vector<8x32xf32> to vector<8x32xbf16>
    %c0_39 = arith.constant 0 : index
    %c0_40 = arith.constant 0 : index
    %113 = vector.load %arg8[%c0_39, %c0_40] : memref<32x128xbf16, #tpu.memory_space<vmem>>, vector<32x128xbf16>
    %cst_41 = arith.constant dense<0.000000e+00> : vector<8x128xf32>
    %114 = tpu.matmul %112, %113, %cst_41 {dimension_numbers = #tpu.dot_dimension_numbers<[1], [0], [0], [1], [0, 0, 1, 1], [], []>} : vector<8x32xbf16>, vector<32x128xbf16>, vector<8x128xf32> -> vector<8x128xf32>
    %115 = vector.shape_cast %15 : vector<128xf32> to vector<1x128xf32>
    %116 = vector.broadcast %115 : vector<1x128xf32> to vector<8x128xf32>
    %117 = arith.addf %114, %116 : vector<8x128xf32>
    %cst_42 = arith.constant 5.000000e-01 : f32
    %118 = vector.broadcast %cst_42 : f32 to vector<8x128xf32>
    %119 = arith.mulf %118, %117 : vector<8x128xf32>
    %cst_43 = arith.constant 0.707106769 : f32
    %120 = vector.broadcast %cst_43 : f32 to vector<8x128xf32>
    %121 = arith.mulf %117, %120 : vector<8x128xf32>
    %122 = math.erf %121 : vector<8x128xf32>
    %cst_44 = arith.constant 1.000000e+00 : f32
    %123 = vector.broadcast %cst_44 : f32 to vector<8x128xf32>
    %124 = arith.addf %123, %122 : vector<8x128xf32>
    %125 = arith.mulf %119, %124 : vector<8x128xf32>
    %126 = arith.truncf %125 : vector<8x128xf32> to vector<8x128xbf16>
    %c0_45 = arith.constant 0 : index
    %c0_46 = arith.constant 0 : index
    %127 = vector.load %arg9[%c0_45, %c0_46] : memref<128x32xbf16, #tpu.memory_space<vmem>>, vector<128x32xbf16>
    %cst_47 = arith.constant dense<0.000000e+00> : vector<8x32xf32>
    %128 = tpu.matmul %126, %127, %cst_47 {dimension_numbers = #tpu.dot_dimension_numbers<[1], [0], [0], [1], [0, 0, 1, 1], [], []>} : vector<8x128xbf16>, vector<128x32xbf16>, vector<8x32xf32> -> vector<8x32xf32>
    %129 = vector.shape_cast %13 : vector<32xf32> to vector<1x32xf32>
    %130 = vector.broadcast %129 : vector<1x32xf32> to vector<8x32xf32>
    %131 = arith.addf %128, %130 : vector<8x32xf32>
    %132 = arith.addf %87, %131 : vector<8x32xf32>
    %c0_48 = arith.constant 0 : index
    %c0_49 = arith.constant 0 : index
    %133 = vector.load %arg11[%c0_48, %c0_49] : memref<8x32xf32, #tpu.memory_space<vmem>>, vector<8x32xf32>
    tpu.vector_store %arg11[%c0_48, %c0_49], %132 {strides = array<i32>} : memref<8x32xf32, #tpu.memory_space<vmem>>, vector<8x32xf32>,
    return
  }
  func.func @transform_0(%arg0: i32) -> (i32, i32) {
    %c0_i32 = arith.constant 0 : i32
    %c0_i32_0 = arith.constant 0 : i32
    return %arg0, %c0_i32 : i32, i32
  }
  func.func @transform_1(%arg0: i32) -> (i32, i32, i32) {
    %c0_i32 = arith.constant 0 : i32
    %c0_i32_0 = arith.constant 0 : i32
    %c0_i32_1 = arith.constant 0 : i32
    %c0_i32_2 = arith.constant 0 : i32
    return %c0_i32, %c0_i32_0, %c0_i32_1 : i32, i32, i32
  }
  func.func @transform_2(%arg0: i32) -> (i32, i32, i32) {
    %c0_i32 = arith.constant 0 : i32
    %c0_i32_0 = arith.constant 0 : i32
    %c0_i32_1 = arith.constant 0 : i32
    %c0_i32_2 = arith.constant 0 : i32
    return %c0_i32, %c0_i32_0, %c0_i32_1 : i32, i32, i32
  }
  func.func @transform_3(%arg0: i32) -> (i32, i32, i32) {
    %c0_i32 = arith.constant 0 : i32
    %c0_i32_0 = arith.constant 0 : i32
    %c0_i32_1 = arith.constant 0 : i32
    %c0_i32_2 = arith.constant 0 : i32
    return %c0_i32, %c0_i32_0, %c0_i32_1 : i32, i32, i32
  }
  func.func @transform_4(%arg0: i32) -> (i32, i32, i32) {
    %c0_i32 = arith.constant 0 : i32
    %c0_i32_0 = arith.constant 0 : i32
    %c0_i32_1 = arith.constant 0 : i32
    %c0_i32_2 = arith.constant 0 : i32
    return %c0_i32, %c0_i32_0, %c0_i32_1 : i32, i32, i32
  }
  func.func @transform_5(%arg0: i32) -> (i32, i32, i32) {
    %c0_i32 = arith.constant 0 : i32
    %c0_i32_0 = arith.constant 0 : i32
    %c0_i32_1 = arith.constant 0 : i32
    %c0_i32_2 = arith.constant 0 : i32
    return %c0_i32, %c0_i32_0, %c0_i32_1 : i32, i32, i32
  }
  func.func @transform_6(%arg0: i32) -> (i32, i32, i32) {
    %c0_i32 = arith.constant 0 : i32
    %c0_i32_0 = arith.constant 0 : i32
    %c0_i32_1 = arith.constant 0 : i32
    %c0_i32_2 = arith.constant 0 : i32
    return %c0_i32, %c0_i32_0, %c0_i32_1 : i32, i32, i32
  }
  func.func @transform_7(%arg0: i32) -> (i32, i32) {
    %c0_i32 = arith.constant 0 : i32
    %c0_i32_0 = arith.constant 0 : i32
    %c0_i32_1 = arith.constant 0 : i32
    return %c0_i32, %c0_i32_0 : i32, i32
  }
  func.func @transform_8(%arg0: i32) -> (i32, i32) {
    %c0_i32 = arith.constant 0 : i32
    %c0_i32_0 = arith.constant 0 : i32
    %c0_i32_1 = arith.constant 0 : i32
    return %c0_i32, %c0_i32_0 : i32, i32
  }
  func.func @transform_9(%arg0: i32) -> (i32, i32) {
    %c0_i32 = arith.constant 0 : i32
    %c0_i32_0 = arith.constant 0 : i32
    %c0_i32_1 = arith.constant 0 : i32
    return %c0_i32, %c0_i32_0 : i32, i32
  }
  func.func @transform_10(%arg0: i32) -> (i32, i32) {
    %c0_i32 = arith.constant 0 : i32
    %c0_i32_0 = arith.constant 0 : i32
    return %arg0, %c0_i32 : i32, i32
  }
}

</mosaic_0001>

<llo_original>
// kernel: tpu_custom_call.1
$region0: #{tpu_custom_call.1}
  #allocation0 [shape = 'u32[]', space=smem, size = 0x4, offset = 0x4, fixed_abs, tag = 'smem constant byte address 0x4 - core index']
  #allocation1 [shape = 'u32[144,128]{1,0:T(1,128)}', space=vmem, size = 0x12000, scoped, tag = 'internal scratch']
  %s0 = inlined_call_operand.vmem [shape: f32[16,32], index: 0, kind: input, shape index: {}]
  %s1 = inlined_call_operand.vmem [shape: bf16[4,32,8], index: 1, kind: input, shape index: {}]
  %s2 = inlined_call_operand.vmem [shape: bf16[4,32,8], index: 2, kind: input, shape index: {}]
  %s3 = inlined_call_operand.vmem [shape: bf16[4,32,32], index: 3, kind: input, shape index: {}]
  %s4 = inlined_call_operand.vmem [shape: f32[4,1,8], index: 4, kind: input, shape index: {}]
  %s5 = inlined_call_operand.vmem [shape: f32[4,1,8], index: 5, kind: input, shape index: {}]
  %s6 = inlined_call_operand.vmem [shape: f32[4,1,32], index: 6, kind: input, shape index: {}]
  %s7 = inlined_call_operand.vmem [shape: bf16[32,128], index: 7, kind: input, shape index: {}]
  %s8 = inlined_call_operand.vmem [shape: bf16[128,32], index: 8, kind: input, shape index: {}]
  %s9 = inlined_call_operand.vmem [shape: f32[8,128], index: 9, kind: input, shape index: {}]
  %s10 = inlined_call_operand.hbm [shape: f32[16,32], index: 10, kind: output, shape index: {}]
  %s11 = sld [smem:[#allocation0]]
  $region73: #{tpu_custom_call.1} parent=0
    _
  %s13 = ssub.s32 1, %s11
  %s14 = scalar_select 0, %s13, %s11
  $region1: #{tpu_custom_call.1} parent=0
    #allocation2 [shape = 'u8[8192]{0}', space=vmem, size = 0x2000, scoped, tag = 'output window, operand 0']
    #allocation3 [shape = 's32[2]{0}', space=sflag, size = 0x8, scoped, tag = 'scoped memory for tpu_custom_call.1']
    %15 = vsyncpa [#allocation3], 0
    %s16 = scalar_lea.sflag [#allocation3], 1
    %17 = vsyncpa %s16, 0
    loop: start=0, step=1, limit=4
    $region2: #{tpu_custom_call.1} parent=1 // loop_pre_header
      _
    $region3: #{tpu_custom_call.1} parent=1 // loop_header
      %s19 = sphi 0, %s23
      %p20 = scmp.ge.s32.totalorder %s19, 4
      %s29 = sphi 0, %s31
      %s32 = sphi 0, %s29
      %s33 = sphi 0, %s32
      %s49 = sphi 0, %s33
      %s53 = sphi 0, %s53
      %s55 = sphi 0, %s53
      %s56 = sphi 0, %s55
      %s70 = sphi 0, %s56
      %s74 = sphi 0, %s74
      %s76 = sphi 0, %s74
      %s77 = sphi 0, %s76
      %s91 = sphi 0, %s77
      %s95 = sphi 0, %s95
      %s97 = sphi 0, %s95
      %s98 = sphi 0, %s97
      %s112 = sphi 0, %s98
      %s116 = sphi 0, %s116
      %s118 = sphi 0, %s116
      %s119 = sphi 0, %s118
      %s133 = sphi 0, %s119
      %s137 = sphi 0, %s137
      %s139 = sphi 0, %s137
      %s140 = sphi 0, %s139
      %s154 = sphi 0, %s140
      %s158 = sphi 0, %s158
      %s160 = sphi 0, %s158
      %s161 = sphi 0, %s160
      %s175 = sphi 0, %s161
      %s179 = sphi 0, %s179
      %s181 = sphi 0, %s179
      %s182 = sphi 0, %s181
      %s196 = sphi 0, %s182
      %s200 = sphi 0, %s200
      %s202 = sphi 0, %s200
      %s203 = sphi 0, %s202
      %s217 = sphi 0, %s203
      %s221 = sphi 0, %s221
      %s223 = sphi 0, %s221
      %s224 = sphi 0, %s223
      %s238 = sphi 0, %s224
      %s244 = sphi 0, %s246
      %s247 = sphi 0, %s244
      %s248 = sphi 0, %s247
      %s264 = sphi 0, %s248
    $region4: #{tpu_custom_call.1} parent=1 // loop_header_branch
      %22 = sbr.rel (%p20) target = $region8
    $region5: #{tpu_custom_call.1} parent=1 // loop_body
      %s24 = ssub.s32 %s19, 1
      %s25 = ssub.s32 %s19, 2
      %s26 = sadd.s32 %s19, 1
      %s27 = ssub.s32 %s19, %s26
      %p28 = scmp.eq.s32.totalorder %s27, 0
      %s30 = sadd.s32 %s29, 1
      %s31 = scalar_select %p28, %s29, %s30
      %p34 = pneg %p28
      %p35 = scmp.eq.s32.totalorder %s19, 1
      %p36 = por %p34, %p35
      %p37 = scmp.ne.s32.totalorder %s29, %s32
      %p38 = scmp.eq.s32.totalorder %s19, 0
      %p39 = por %p37, %p38
      %p40 = scmp.ne.s32.totalorder %s29, %s32
      %p41 = scmp.eq.s32.totalorder %s24, 1
      %p42 = por %p40, %p41
      %p43 = scmp.ne.s32.totalorder %s32, %s33
      %p44 = scmp.eq.s32.totalorder %s24, 0
      %p45 = por %p43, %p44
      %p46 = scmp.ne.s32.totalorder %s32, %s33
      %p47 = scmp.eq.s32.totalorder %s25, 1
      %p48 = por %p46, %p47
      %p50 = scmp.ne.s32.totalorder %s33, %s49
      %p51 = scmp.eq.s32.totalorder %s25, 0
      %p52 = por %p50, %p51
      %s54 = sadd.s32 %s53, 1
      %p57 = scmp.eq.s32.totalorder %s19, 1
      %p58 = scmp.ne.s32.totalorder %s53, %s55
      %p59 = scmp.eq.s32.totalorder %s19, 0
      %p60 = por %p58, %p59
      %p61 = scmp.ne.s32.totalorder %s53, %s55
      %p62 = scmp.eq.s32.totalorder %s24, 1
      %p63 = por %p61, %p62
      %p64 = scmp.ne.s32.totalorder %s55, %s56
      %p65 = scmp.eq.s32.totalorder %s24, 0
      %p66 = por %p64, %p65
      %p67 = scmp.ne.s32.totalorder %s55, %s56
      %p68 = scmp.eq.s32.totalorder %s25, 1
      %p69 = por %p67, %p68
      %p71 = scmp.ne.s32.totalorder %s56, %s70
      %p72 = scmp.eq.s32.totalorder %s25, 0
      %p73 = por %p71, %p72
      %s75 = sadd.s32 %s74, 1
      %p78 = scmp.eq.s32.totalorder %s19, 1
      %p79 = scmp.ne.s32.totalorder %s74, %s76
      %p80 = scmp.eq.s32.totalorder %s19, 0
      %p81 = por %p79, %p80
      %p82 = scmp.ne.s32.totalorder %s74, %s76
      %p83 = scmp.eq.s32.totalorder %s24, 1
      %p84 = por %p82, %p83
      %p85 = scmp.ne.s32.totalorder %s76, %s77
      %p86 = scmp.eq.s32.totalorder %s24, 0
      %p87 = por %p85, %p86
      %p88 = scmp.ne.s32.totalorder %s76, %s77
      %p89 = scmp.eq.s32.totalorder %s25, 1
      %p90 = por %p88, %p89
      %p92 = scmp.ne.s32.totalorder %s77, %s91
      %p93 = scmp.eq.s32.totalorder %s25, 0
      %p94 = por %p92, %p93
      %s96 = sadd.s32 %s95, 1
      %p99 = scmp.eq.s32.totalorder %s19, 1
      %p100 = scmp.ne.s32.totalorder %s95, %s97
      %p101 = scmp.eq.s32.totalorder %s19, 0
      %p102 = por %p100, %p101
      %p103 = scmp.ne.s32.totalorder %s95, %s97
      %p104 = scmp.eq.s32.totalorder %s24, 1
      %p105 = por %p103, %p104
      %p106 = scmp.ne.s32.totalorder %s97, %s98
      %p107 = scmp.eq.s32.totalorder %s24, 0
      %p108 = por %p106, %p107
      %p109 = scmp.ne.s32.totalorder %s97, %s98
      %p110 = scmp.eq.s32.totalorder %s25, 1
      %p111 = por %p109, %p110
      %p113 = scmp.ne.s32.totalorder %s98, %s112
      %p114 = scmp.eq.s32.totalorder %s25, 0
      %p115 = por %p113, %p114
      %s117 = sadd.s32 %s116, 1
      %p120 = scmp.eq.s32.totalorder %s19, 1
      %p121 = scmp.ne.s32.totalorder %s116, %s118
      %p122 = scmp.eq.s32.totalorder %s19, 0
      %p123 = por %p121, %p122
      %p124 = scmp.ne.s32.totalorder %s116, %s118
      %p125 = scmp.eq.s32.totalorder %s24, 1
      %p126 = por %p124, %p125
      %p127 = scmp.ne.s32.totalorder %s118, %s119
      %p128 = scmp.eq.s32.totalorder %s24, 0
      %p129 = por %p127, %p128
      %p130 = scmp.ne.s32.totalorder %s118, %s119
      %p131 = scmp.eq.s32.totalorder %s25, 1
      %p132 = por %p130, %p131
      %p134 = scmp.ne.s32.totalorder %s119, %s133
      %p135 = scmp.eq.s32.totalorder %s25, 0
      %p136 = por %p134, %p135
      %s138 = sadd.s32 %s137, 1
      %p141 = scmp.eq.s32.totalorder %s19, 1
      %p142 = scmp.ne.s32.totalorder %s137, %s139
      %p143 = scmp.eq.s32.totalorder %s19, 0
      %p144 = por %p142, %p143
      %p145 = scmp.ne.s32.totalorder %s137, %s139
      %p146 = scmp.eq.s32.totalorder %s24, 1
      %p147 = por %p145, %p146
      %p148 = scmp.ne.s32.totalorder %s139, %s140
      %p149 = scmp.eq.s32.totalorder %s24, 0
      %p150 = por %p148, %p149
      %p151 = scmp.ne.s32.totalorder %s139, %s140
      %p152 = scmp.eq.s32.totalorder %s25, 1
      %p153 = por %p151, %p152
      %p155 = scmp.ne.s32.totalorder %s140, %s154
      %p156 = scmp.eq.s32.totalorder %s25, 0
      %p157 = por %p155, %p156
      %s159 = sadd.s32 %s158, 1
      %p162 = scmp.eq.s32.totalorder %s19, 1
      %p163 = scmp.ne.s32.totalorder %s158, %s160
      %p164 = scmp.eq.s32.totalorder %s19, 0
      %p165 = por %p163, %p164
      %p166 = scmp.ne.s32.totalorder %s158, %s160
      %p167 = scmp.eq.s32.totalorder %s24, 1
      %p168 = por %p166, %p167
      %p169 = scmp.ne.s32.totalorder %s160, %s161
      %p170 = scmp.eq.s32.totalorder %s24, 0
      %p171 = por %p169, %p170
      %p172 = scmp.ne.s32.totalorder %s160, %s161
      %p173 = scmp.eq.s32.totalorder %s25, 1
      %p174 = por %p172, %p173
      %p176 = scmp.ne.s32.totalorder %s161, %s175
      %p177 = scmp.eq.s32.totalorder %s25, 0
      %p178 = por %p176, %p177
      %s180 = sadd.s32 %s179, 1
      %p183 = scmp.eq.s32.totalorder %s19, 1
      %p184 = scmp.ne.s32.totalorder %s179, %s181
      %p185 = scmp.eq.s32.totalorder %s19, 0
      %p186 = por %p184, %p185
      %p187 = scmp.ne.s32.totalorder %s179, %s181
      %p188 = scmp.eq.s32.totalorder %s24, 1
      %p189 = por %p187, %p188
      %p190 = scmp.ne.s32.totalorder %s181, %s182
      %p191 = scmp.eq.s32.totalorder %s24, 0
      %p192 = por %p190, %p191
      %p193 = scmp.ne.s32.totalorder %s181, %s182
      %p194 = scmp.eq.s32.totalorder %s25, 1
      %p195 = por %p193, %p194
      %p197 = scmp.ne.s32.totalorder %s182, %s196
      %p198 = scmp.eq.s32.totalorder %s25, 0
      %p199 = por %p197, %p198
      %s201 = sadd.s32 %s200, 1
      %p204 = scmp.eq.s32.totalorder %s19, 1
      %p205 = scmp.ne.s32.totalorder %s200, %s202
      %p206 = scmp.eq.s32.totalorder %s19, 0
      %p207 = por %p205, %p206
      %p208 = scmp.ne.s32.totalorder %s200, %s202
      %p209 = scmp.eq.s32.totalorder %s24, 1
      %p210 = por %p208, %p209
      %p211 = scmp.ne.s32.totalorder %s202, %s203
      %p212 = scmp.eq.s32.totalorder %s24, 0
      %p213 = por %p211, %p212
      %p214 = scmp.ne.s32.totalorder %s202, %s203
      %p215 = scmp.eq.s32.totalorder %s25, 1
      %p216 = por %p214, %p215
      %p218 = scmp.ne.s32.totalorder %s203, %s217
      %p219 = scmp.eq.s32.totalorder %s25, 0
      %p220 = por %p218, %p219
      %s222 = sadd.s32 %s221, 1
      %p225 = scmp.eq.s32.totalorder %s19, 1
      %p226 = scmp.ne.s32.totalorder %s221, %s223
      %p227 = scmp.eq.s32.totalorder %s19, 0
      %p228 = por %p226, %p227
      %p229 = scmp.ne.s32.totalorder %s221, %s223
      %p230 = scmp.eq.s32.totalorder %s24, 1
      %p231 = por %p229, %p230
      %p232 = scmp.ne.s32.totalorder %s223, %s224
      %p233 = scmp.eq.s32.totalorder %s24, 0
      %p234 = por %p232, %p233
      %p235 = scmp.ne.s32.totalorder %s223, %s224
      %p236 = scmp.eq.s32.totalorder %s25, 1
      %p237 = por %p235, %p236
      %p239 = scmp.ne.s32.totalorder %s224, %s238
      %p240 = scmp.eq.s32.totalorder %s25, 0
      %p241 = por %p239, %p240
      %s242 = ssub.s32 %s19, %s26
      %p243 = scmp.eq.s32.totalorder %s242, 0
      %s245 = sadd.s32 %s244, 1
      %s246 = scalar_select %p243, %s244, %s245
      %p249 = pneg %p243
      %p250 = scmp.eq.s32.totalorder %s19, 1
      %p251 = por %p249, %p250
      %p252 = scmp.ne.s32.totalorder %s244, %s247
      %p253 = scmp.eq.s32.totalorder %s19, 0
      %p254 = por %p252, %p253
      %p255 = scmp.ne.s32.totalorder %s244, %s247
      %p256 = scmp.eq.s32.totalorder %s24, 1
      %p257 = por %p255, %p256
      %p258 = scmp.ne.s32.totalorder %s247, %s248
      %p259 = scmp.eq.s32.totalorder %s24, 0
      %p260 = por %p258, %p259
      %p261 = scmp.ne.s32.totalorder %s247, %s248
      %p262 = scmp.eq.s32.totalorder %s25, 1
      %p263 = por %p261, %p262
      %p265 = scmp.ne.s32.totalorder %s248, %s264
      %p266 = scmp.eq.s32.totalorder %s25, 0
      %p267 = por %p265, %p266
      %p268 = scmp.le.s32.totalorder 1, %s19
      %p269 = scmp.lt.s32.totalorder %s19, 3
      %p270 = pnand %p268, %p269
      %p271 = pneg %p270
      // Predicated region
      $region9: #{tpu_custom_call.1} parent=5 // pred_check
        _
      $region10: #{tpu_custom_call.1} parent=5 // pred_check_branch
        %273 = sbr.rel (%p270) target = $region12
      $region11: #{tpu_custom_call.1} parent=5 // pred_region
        %s274 = ssub.s32 %s19, 1
        // Predicated region
        $region13: #{tpu_custom_call.1} parent=11 // pred_check
          %p275 = pneg %p66
        $region14: #{tpu_custom_call.1} parent=11 // pred_check_branch
          %277 = sbr.rel (%p275) target = $region16
        $region15: #{tpu_custom_call.1} parent=11 // pred_region
          _
        $region16: #{tpu_custom_call.1} parent=11 // pred_fallthru
          _
        // Predicated region
        $region17: #{tpu_custom_call.1} parent=11 // pred_check
          %p278 = pneg %p87
        $region18: #{tpu_custom_call.1} parent=11 // pred_check_branch
          %280 = sbr.rel (%p278) target = $region20
        $region19: #{tpu_custom_call.1} parent=11 // pred_region
          _
        $region20: #{tpu_custom_call.1} parent=11 // pred_fallthru
          _
        // Predicated region
        $region21: #{tpu_custom_call.1} parent=11 // pred_check
          %p281 = pneg %p108
        $region22: #{tpu_custom_call.1} parent=11 // pred_check_branch
          %283 = sbr.rel (%p281) target = $region24
        $region23: #{tpu_custom_call.1} parent=11 // pred_region
          _
        $region24: #{tpu_custom_call.1} parent=11 // pred_fallthru
          _
        // Predicated region
        $region25: #{tpu_custom_call.1} parent=11 // pred_check
          %p284 = pneg %p129
        $region26: #{tpu_custom_call.1} parent=11 // pred_check_branch
          %286 = sbr.rel (%p284) target = $region28
        $region27: #{tpu_custom_call.1} parent=11 // pred_region
          _
        $region28: #{tpu_custom_call.1} parent=11 // pred_fallthru
          _
        // Predicated region
        $region29: #{tpu_custom_call.1} parent=11 // pred_check
          %p287 = pneg %p150
        $region30: #{tpu_custom_call.1} parent=11 // pred_check_branch
          %289 = sbr.rel (%p287) target = $region32
        $region31: #{tpu_custom_call.1} parent=11 // pred_region
          _
        $region32: #{tpu_custom_call.1} parent=11 // pred_fallthru
          _
        // Predicated region
        $region33: #{tpu_custom_call.1} parent=11 // pred_check
          %p290 = pneg %p171
        $region34: #{tpu_custom_call.1} parent=11 // pred_check_branch
          %292 = sbr.rel (%p290) target = $region36
        $region35: #{tpu_custom_call.1} parent=11 // pred_region
          _
        $region36: #{tpu_custom_call.1} parent=11 // pred_fallthru
          _
        // Predicated region
        $region37: #{tpu_custom_call.1} parent=11 // pred_check
          %p293 = pneg %p192
        $region38: #{tpu_custom_call.1} parent=11 // pred_check_branch
          %295 = sbr.rel (%p293) target = $region40
        $region39: #{tpu_custom_call.1} parent=11 // pred_region
          _
        $region40: #{tpu_custom_call.1} parent=11 // pred_fallthru
          _
        // Predicated region
        $region41: #{tpu_custom_call.1} parent=11 // pred_check
          %p296 = pneg %p213
        $region42: #{tpu_custom_call.1} parent=11 // pred_check_branch
          %298 = sbr.rel (%p296) target = $region44
        $region43: #{tpu_custom_call.1} parent=11 // pred_region
          _
        $region44: #{tpu_custom_call.1} parent=11 // pred_fallthru
          _
        // Predicated region
        $region45: #{tpu_custom_call.1} parent=11 // pred_check
          %p299 = pneg %p234
        $region46: #{tpu_custom_call.1} parent=11 // pred_check_branch
          %301 = sbr.rel (%p299) target = $region48
        $region47: #{tpu_custom_call.1} parent=11 // pred_region
          _
        $region48: #{tpu_custom_call.1} parent=11 // pred_fallthru
          _
      $region12: #{tpu_custom_call.1} parent=5 // pred_fallthru
        _
      %p302 = scmp.lt.s32.totalorder %s19, 2
      // Predicated region
      $region49: #{tpu_custom_call.1} parent=5 // pred_check
        %p303 = pneg %p302
      $region50: #{tpu_custom_call.1} parent=5 // pred_check_branch
        %305 = sbr.rel (%p303) target = $region52
      $region51: #{tpu_custom_call.1} parent=5 // pred_region
        // Predicated region
        $region53: #{tpu_custom_call.1} parent=51 // pred_check
          %p306 = pneg %p39
        $region54: #{tpu_custom_call.1} parent=51 // pred_check_branch
          %308 = sbr.rel (%p306) target = $region56
        $region55: #{tpu_custom_call.1} parent=51 // pred_region
          %p309 = scmp.lt.s32.totalorder %s19, 1
          %s310 = scalar_select %p309, %s19, 1
          %s311 = smul.addr %s310, 8
          %s312 = scalar_lea.vmem %s0, %s311
        $region56: #{tpu_custom_call.1} parent=51 // pred_fallthru
          _
      $region52: #{tpu_custom_call.1} parent=5 // pred_fallthru
        _
      %p313 = scmp.le.s32.totalorder 1, %s19
      %p314 = scmp.lt.s32.totalorder %s19, 3
      %p315 = pnand %p313, %p314
      %p316 = pneg %p315
      // Predicated region
      $region57: #{tpu_custom_call.1} parent=5 // pred_check
        _
      $region58: #{tpu_custom_call.1} parent=5 // pred_check_branch
        %318 = sbr.rel (%p315) target = $region60
      $region59: #{tpu_custom_call.1} parent=5 // pred_region
        %s319 = ssub.s32 %s19, 1
        %p320 = scmp.lt.s32.totalorder %s24, 1
        %s321 = scalar_select %p320, %s24, 1
        %s322 = smul.addr %s321, 8
        %s323 = scalar_lea.vmem %s0, %s322
        %p324 = pneg %p45
        %p325 = pneg %p42
        %p326 = pneg %p66
        %p327 = pneg %p63
        %p328 = pneg %p87
        %p329 = pneg %p84
        %p330 = pneg %p108
        %p331 = pneg %p105
        %p332 = pneg %p129
        %p333 = pneg %p126
        %p334 = pneg %p150
        %p335 = pneg %p147
        %p336 = pneg %p171
        %p337 = pneg %p168
        %p338 = pneg %p192
        %p339 = pneg %p189
        %p340 = pneg %p213
        %p341 = pneg %p210
        %p342 = pneg %p234
        %p343 = pneg %p231
        %p344 = pneg %p260
        %p345 = pneg %p257
        %s346 = sand.u32 %s247, 1
        %s347 = scalar_lea.sflag [#allocation3], %s346
        %s348 = sand.u32 %s247, 1
        %s349 = smul.addr %s348, 8
        %s350 = scalar_lea.vmem [#allocation2], %s349
        %p351 = scmp.lt.s32.totalorder %s24, 1
        %s352 = scalar_select %p351, %s24, 1
        %s353 = smul.addr %s352, 8
        %s354 = scalar_lea.vmem %s0, %s353
        %v356 = vld [vmem:[%s354] sm:$0xff]
        %v357 = vld [vmem:[%s9] sm:$0xff]
        %vm358 = vcmask 261120
        %v359 = vsel %vm358, %v356, 0.0
        %360 = vadd.xlane.f32.xlu0 %v359
        %v361 = vpop.xlane.xlu0 %360
        %v362 = vrcp.pop 32.0
        %v363 = vmul.f32 %v361, %v362
        %v364 = vsub.f32 %v356, %v363
        %v365 = vmul.f32 %v364, %v364
        %v366 = vsel %vm358, %v365, 0.0
        %367 = vadd.xlane.f32.xlu0 %v366
        %v368 = vpop.xlane.xlu0 %367
        %v369 = vmul.f32 %v368, %v362
        %v370 = vadd.f32 %v369, 1e-05
        %v371 = vrsqrt.pop %v370
        %v372 = vmul.f32 %v364, %v371
        %v373 = vlaneseq
        %v374 = vshrl.u32 %v373, 7
        %v375 = vsub.s32 0, %v374
        %v376 = vrot.slane %v357, %v375
        %v377 = vmul.f32 %v372, %v376
        %v378 = vlaneseq
        %v379 = vshrl.u32 %v378, 7
        %v380 = vsub.s32 1, %v379
        %v381 = vrot.slane %v357, %v380
        %v382 = vadd.f32 %v377, %v381
        %v383 = vpack.c.bf16 %v382, %v382
        %v384 = vld [vmem:[%s1] sm:$0xf]
        %v385 = vld [vmem:[%s1 + $0x4] sm:$0xf]
        %v386 = vld [vmem:[%s1 + $0x8] sm:$0xf]
        %v387 = vld [vmem:[%s1 + $0xc] sm:$0xf]
        %v388 = vld [vmem:[%s1 + $0x10] sm:$0xf]
        %v389 = vld [vmem:[%s1 + $0x14] sm:$0xf]
        %v390 = vld [vmem:[%s1 + $0x18] sm:$0xf]
        %v391 = vld [vmem:[%s1 + $0x1c] sm:$0xf]
        %v392 = vld [vmem:[%s1 + $0x20] sm:$0xf]
        %v393 = vld [vmem:[%s1 + $0x24] sm:$0xf]
        %v394 = vld [vmem:[%s1 + $0x28] sm:$0xf]
        %v395 = vld [vmem:[%s1 + $0x2c] sm:$0xf]
        %v396 = vld [vmem:[%s1 + $0x30] sm:$0xf]
        %v397 = vld [vmem:[%s1 + $0x34] sm:$0xf]
        %v398 = vld [vmem:[%s1 + $0x38] sm:$0xf]
        %v399 = vld [vmem:[%s1 + $0x3c] sm:$0xf]
        %v400 = vld [vmem:[%s4] sm:$0x1]
        %v401 = vld [vmem:[%s4 + $0x1] sm:$0x1]
        %v402 = vld [vmem:[%s4 + $0x2] sm:$0x1]
        %v403 = vld [vmem:[%s4 + $0x3] sm:$0x1]
        %v408 = vlaneseq
        %v409 = vshrl.u32 %v408, 7
        %v410 = vsub.s32 0, %v409
        %v411 = vrot.slane %v400, %v410
        %v412 = vlaneseq
        %v413 = vshrl.u32 %v412, 7
        %v414 = vsub.s32 0, %v413
        %v415 = vrot.slane %v401, %v414
        %v416 = vlaneseq
        %v417 = vshrl.u32 %v416, 7
        %v418 = vsub.s32 0, %v417
        %v419 = vrot.slane %v402, %v418
        %v420 = vlaneseq
        %v421 = vshrl.u32 %v420, 7
        %v422 = vsub.s32 0, %v421
        %v423 = vrot.slane %v403, %v422
        %v432 = vunpack.c.l.b16 %v384
        %v433 = vunpack.c.l.b16 %v385
        %v434 = vunpack.c.l.b16 %v386
        %v435 = vunpack.c.l.b16 %v387
        %v436 = vpack.c.b16 %v433, %v432
        %v437 = vpack.c.b16 %v435, %v434
        %v441 = vsel %vm358, %v383, 0
        %443 = vmatprep.subr.bf16.mxu0 0
        %444 = vmatpush1.bf16.msra.mxu0 %v436
        %445 = vmatprep.subr.bf16.mxu0 0
        %446 = vmatpush1.bf16.msra.mxu0 %v437
        %447 = vmatprep.subr.bf16.mxu0 0
        %448 = vmatpush1.bf16.msra.mxu0 0
        %449 = vmatprep.subr.bf16.mxu0 0
        %450 = vmatpush1.bf16.msra.mxu0 0
        %451 = vmatprep.subr.bf16.mxu0 0
        %452 = vmatpush1.bf16.msra.mxu0 0
        %453 = vmatprep.subr.bf16.mxu0 0
        %454 = vmatpush1.bf16.msra.mxu0 0
        %455 = vmatprep.subr.bf16.mxu0 0
        %456 = vmatpush1.bf16.msra.mxu0 0
        %457 = vmatprep.subr.bf16.mxu0 0
        %458 = vmatpush1.bf16.msra.mxu0 0
        %459 = vmatprep.subr.bf16.mxu0 0
        %460 = vmatpush1.bf16.msra.mxu0 0
        %461 = vmatprep.subr.bf16.mxu0 0
        %462 = vmatpush1.bf16.msra.mxu0 0
        %463 = vmatprep.subr.bf16.mxu0 0
        %464 = vmatpush1.bf16.msra.mxu0 0
        %465 = vmatprep.subr.bf16.mxu0 0
        %466 = vmatpush1.bf16.msra.mxu0 0
        %467 = vmatprep.subr.bf16.mxu0 0
        %468 = vmatpush1.bf16.msra.mxu0 0
        %469 = vmatprep.subr.bf16.mxu0 0
        %470 = vmatpush1.bf16.msra.mxu0 0
        %471 = vmatprep.subr.bf16.mxu0 0
        %472 = vmatpush1.bf16.msra.mxu0 0
        %473 = vmatprep.subr.bf16.mxu0 0
        %474 = vmatpush1.bf16.msra.mxu0 0
        %475 = vmatprep.mubr.bf16.mxu0 0
        %476 = vmatmul.mubr.bf16.gmra.mrb[0].mxu0 %v441
        %v477 = vpop.f32.mrb[0].mxu0
        %v478 = vadd.f32 %v411, %v477
        %v479 = vpop.f32.mrb[0].mxu0
        %v480 = vpop.f32.mrb[0].mxu0
        %v481 = vpop.f32.mrb[0].mxu0
        %482 = vdwg.mxu0
        %v487 = vunpack.c.l.b16 %v388
        %v488 = vunpack.c.l.b16 %v389
        %v489 = vunpack.c.l.b16 %v390
        %v490 = vunpack.c.l.b16 %v391
        %v491 = vpack.c.b16 %v488, %v487
        %v492 = vpack.c.b16 %v490, %v489
        %495 = vmatprep.subr.bf16.mxu0 0
        %496 = vmatpush1.bf16.msra.mxu0 %v491
        %497 = vmatprep.subr.bf16.mxu0 0
        %498 = vmatpush1.bf16.msra.mxu0 %v492
        %499 = vmatprep.subr.bf16.mxu0 0
        %500 = vmatpush1.bf16.msra.mxu0 0
        %501 = vmatprep.subr.bf16.mxu0 0
        %502 = vmatpush1.bf16.msra.mxu0 0
        %503 = vmatprep.subr.bf16.mxu0 0
        %504 = vmatpush1.bf16.msra.mxu0 0
        %505 = vmatprep.subr.bf16.mxu0 0
        %506 = vmatpush1.bf16.msra.mxu0 0
        %507 = vmatprep.subr.bf16.mxu0 0
        %508 = vmatpush1.bf16.msra.mxu0 0
        %509 = vmatprep.subr.bf16.mxu0 0
        %510 = vmatpush1.bf16.msra.mxu0 0
        %511 = vmatprep.subr.bf16.mxu0 0
        %512 = vmatpush1.bf16.msra.mxu0 0
        %513 = vmatprep.subr.bf16.mxu0 0
        %514 = vmatpush1.bf16.msra.mxu0 0
        %515 = vmatprep.subr.bf16.mxu0 0
        %516 = vmatpush1.bf16.msra.mxu0 0
        %517 = vmatprep.subr.bf16.mxu0 0
        %518 = vmatpush1.bf16.msra.mxu0 0
        %519 = vmatprep.subr.bf16.mxu0 0
        %520 = vmatpush1.bf16.msra.mxu0 0
        %521 = vmatprep.subr.bf16.mxu0 0
        %522 = vmatpush1.bf16.msra.mxu0 0
        %523 = vmatprep.subr.bf16.mxu0 0
        %524 = vmatpush1.bf16.msra.mxu0 0
        %525 = vmatprep.subr.bf16.mxu0 0
        %526 = vmatpush1.bf16.msra.mxu0 0
        %527 = vmatprep.mubr.bf16.mxu0 0
        %528 = vmatmul.mubr.bf16.gmra.mrb[0].mxu0 %v441
        %v529 = vpop.f32.mrb[0].mxu0
        %v530 = vadd.f32 %v415, %v529
        %v531 = vpop.f32.mrb[0].mxu0
        %v532 = vpop.f32.mrb[0].mxu0
        %v533 = vpop.f32.mrb[0].mxu0
        %534 = vdwg.mxu0
        %v539 = vunpack.c.l.b16 %v392
        %v540 = vunpack.c.l.b16 %v393
        %v541 = vunpack.c.l.b16 %v394
        %v542 = vunpack.c.l.b16 %v395
        %v543 = vpack.c.b16 %v540, %v539
        %v544 = vpack.c.b16 %v542, %v541
        %547 = vmatprep.subr.bf16.mxu0 0
        %548 = vmatpush1.bf16.msra.mxu0 %v543
        %549 = vmatprep.subr.bf16.mxu0 0
        %550 = vmatpush1.bf16.msra.mxu0 %v544
        %551 = vmatprep.subr.bf16.mxu0 0
        %552 = vmatpush1.bf16.msra.mxu0 0
        %553 = vmatprep.subr.bf16.mxu0 0
        %554 = vmatpush1.bf16.msra.mxu0 0
        %555 = vmatprep.subr.bf16.mxu0 0
        %556 = vmatpush1.bf16.msra.mxu0 0
        %557 = vmatprep.subr.bf16.mxu0 0
        %558 = vmatpush1.bf16.msra.mxu0 0
        %559 = vmatprep.subr.bf16.mxu0 0
        %560 = vmatpush1.bf16.msra.mxu0 0
        %561 = vmatprep.subr.bf16.mxu0 0
        %562 = vmatpush1.bf16.msra.mxu0 0
        %563 = vmatprep.subr.bf16.mxu0 0
        %564 = vmatpush1.bf16.msra.mxu0 0
        %565 = vmatprep.subr.bf16.mxu0 0
        %566 = vmatpush1.bf16.msra.mxu0 0
        %567 = vmatprep.subr.bf16.mxu0 0
        %568 = vmatpush1.bf16.msra.mxu0 0
        %569 = vmatprep.subr.bf16.mxu0 0
        %570 = vmatpush1.bf16.msra.mxu0 0
        %571 = vmatprep.subr.bf16.mxu0 0
        %572 = vmatpush1.bf16.msra.mxu0 0
        %573 = vmatprep.subr.bf16.mxu0 0
        %574 = vmatpush1.bf16.msra.mxu0 0
        %575 = vmatprep.subr.bf16.mxu0 0
        %576 = vmatpush1.bf16.msra.mxu0 0
        %577 = vmatprep.subr.bf16.mxu0 0
        %578 = vmatpush1.bf16.msra.mxu0 0
        %579 = vmatprep.mubr.bf16.mxu0 0
        %580 = vmatmul.mubr.bf16.gmra.mrb[0].mxu0 %v441
        %v581 = vpop.f32.mrb[0].mxu0
        %v582 = vadd.f32 %v419, %v581
        %v583 = vpop.f32.mrb[0].mxu0
        %v584 = vpop.f32.mrb[0].mxu0
        %v585 = vpop.f32.mrb[0].mxu0
        %586 = vdwg.mxu0
        %v591 = vunpack.c.l.b16 %v396
        %v592 = vunpack.c.l.b16 %v397
        %v593 = vunpack.c.l.b16 %v398
        %v594 = vunpack.c.l.b16 %v399
        %v595 = vpack.c.b16 %v592, %v591
        %v596 = vpack.c.b16 %v594, %v593
        %599 = vmatprep.subr.bf16.mxu0 0
        %600 = vmatpush1.bf16.msra.mxu0 %v595
        %601 = vmatprep.subr.bf16.mxu0 0
        %602 = vmatpush1.bf16.msra.mxu0 %v596
        %603 = vmatprep.subr.bf16.mxu0 0
        %604 = vmatpush1.bf16.msra.mxu0 0
        %605 = vmatprep.subr.bf16.mxu0 0
        %606 = vmatpush1.bf16.msra.mxu0 0
        %607 = vmatprep.subr.bf16.mxu0 0
        %608 = vmatpush1.bf16.msra.mxu0 0
        %609 = vmatprep.subr.bf16.mxu0 0
        %610 = vmatpush1.bf16.msra.mxu0 0
        %611 = vmatprep.subr.bf16.mxu0 0
        %612 = vmatpush1.bf16.msra.mxu0 0
        %613 = vmatprep.subr.bf16.mxu0 0
        %614 = vmatpush1.bf16.msra.mxu0 0
        %615 = vmatprep.subr.bf16.mxu0 0
        %616 = vmatpush1.bf16.msra.mxu0 0
        %617 = vmatprep.subr.bf16.mxu0 0
        %618 = vmatpush1.bf16.msra.mxu0 0
        %619 = vmatprep.subr.bf16.mxu0 0
        %620 = vmatpush1.bf16.msra.mxu0 0
        %621 = vmatprep.subr.bf16.mxu0 0
        %622 = vmatpush1.bf16.msra.mxu0 0
        %623 = vmatprep.subr.bf16.mxu0 0
        %624 = vmatpush1.bf16.msra.mxu0 0
        %625 = vmatprep.subr.bf16.mxu0 0
        %626 = vmatpush1.bf16.msra.mxu0 0
        %627 = vmatprep.subr.bf16.mxu0 0
        %628 = vmatpush1.bf16.msra.mxu0 0
        %629 = vmatprep.subr.bf16.mxu0 0
        %630 = vmatpush1.bf16.msra.mxu0 0
        %631 = vmatprep.mubr.bf16.mxu0 0
        %632 = vmatmul.mubr.bf16.gmra.mrb[0].mxu0 %v441
        %v633 = vpop.f32.mrb[0].mxu0
        %v634 = vadd.f32 %v423, %v633
        %v635 = vpop.f32.mrb[0].mxu0
        %v636 = vpop.f32.mrb[0].mxu0
        %v637 = vpop.f32.mrb[0].mxu0
        %638 = vdwg.mxu0
        %v639 = vld [vmem:[%s2] sm:$0xf]
        %v640 = vld [vmem:[%s2 + $0x4] sm:$0xf]
        %v641 = vld [vmem:[%s2 + $0x8] sm:$0xf]
        %v642 = vld [vmem:[%s2 + $0xc] sm:$0xf]
        %v643 = vld [vmem:[%s2 + $0x10] sm:$0xf]
        %v644 = vld [vmem:[%s2 + $0x14] sm:$0xf]
        %v645 = vld [vmem:[%s2 + $0x18] sm:$0xf]
        %v646 = vld [vmem:[%s2 + $0x1c] sm:$0xf]
        %v647 = vld [vmem:[%s2 + $0x20] sm:$0xf]
        %v648 = vld [vmem:[%s2 + $0x24] sm:$0xf]
        %v649 = vld [vmem:[%s2 + $0x28] sm:$0xf]
        %v650 = vld [vmem:[%s2 + $0x2c] sm:$0xf]
        %v651 = vld [vmem:[%s2 + $0x30] sm:$0xf]
        %v652 = vld [vmem:[%s2 + $0x34] sm:$0xf]
        %v653 = vld [vmem:[%s2 + $0x38] sm:$0xf]
        %v654 = vld [vmem:[%s2 + $0x3c] sm:$0xf]
        %v655 = vld [vmem:[%s5] sm:$0x1]
        %v656 = vld [vmem:[%s5 + $0x1] sm:$0x1]
        %v657 = vld [vmem:[%s5 + $0x2] sm:$0x1]
        %v658 = vld [vmem:[%s5 + $0x3] sm:$0x1]
        %v663 = vlaneseq
        %v664 = vshrl.u32 %v663, 7
        %v665 = vsub.s32 0, %v664
        %v666 = vrot.slane %v655, %v665
        %v667 = vlaneseq
        %v668 = vshrl.u32 %v667, 7
        %v669 = vsub.s32 0, %v668
        %v670 = vrot.slane %v656, %v669
        %v671 = vlaneseq
        %v672 = vshrl.u32 %v671, 7
        %v673 = vsub.s32 0, %v672
        %v674 = vrot.slane %v657, %v673
        %v675 = vlaneseq
        %v676 = vshrl.u32 %v675, 7
        %v677 = vsub.s32 0, %v676
        %v678 = vrot.slane %v658, %v677
        %v687 = vunpack.c.l.b16 %v639
        %v688 = vunpack.c.l.b16 %v640
        %v689 = vunpack.c.l.b16 %v641
        %v690 = vunpack.c.l.b16 %v642
        %v691 = vpack.c.b16 %v688, %v687
        %v692 = vpack.c.b16 %v690, %v689
        %695 = vmatprep.subr.bf16.mxu0 0
        %696 = vmatpush1.bf16.msra.mxu0 %v691
        %697 = vmatprep.subr.bf16.mxu0 0
        %698 = vmatpush1.bf16.msra.mxu0 %v692
        %699 = vmatprep.subr.bf16.mxu0 0
        %700 = vmatpush1.bf16.msra.mxu0 0
        %701 = vmatprep.subr.bf16.mxu0 0
        %702 = vmatpush1.bf16.msra.mxu0 0
        %703 = vmatprep.subr.bf16.mxu0 0
        %704 = vmatpush1.bf16.msra.mxu0 0
        %705 = vmatprep.subr.bf16.mxu0 0
        %706 = vmatpush1.bf16.msra.mxu0 0
        %707 = vmatprep.subr.bf16.mxu0 0
        %708 = vmatpush1.bf16.msra.mxu0 0
        %709 = vmatprep.subr.bf16.mxu0 0
        %710 = vmatpush1.bf16.msra.mxu0 0
        %711 = vmatprep.subr.bf16.mxu0 0
        %712 = vmatpush1.bf16.msra.mxu0 0
        %713 = vmatprep.subr.bf16.mxu0 0
        %714 = vmatpush1.bf16.msra.mxu0 0
        %715 = vmatprep.subr.bf16.mxu0 0
        %716 = vmatpush1.bf16.msra.mxu0 0
        %717 = vmatprep.subr.bf16.mxu0 0
        %718 = vmatpush1.bf16.msra.mxu0 0
        %719 = vmatprep.subr.bf16.mxu0 0
        %720 = vmatpush1.bf16.msra.mxu0 0
        %721 = vmatprep.subr.bf16.mxu0 0
        %722 = vmatpush1.bf16.msra.mxu0 0
        %723 = vmatprep.subr.bf16.mxu0 0
        %724 = vmatpush1.bf16.msra.mxu0 0
        %725 = vmatprep.subr.bf16.mxu0 0
        %726 = vmatpush1.bf16.msra.mxu0 0
        %727 = vmatprep.mubr.bf16.mxu0 0
        %728 = vmatmul.mubr.bf16.gmra.mrb[0].mxu0 %v441
        %v729 = vpop.f32.mrb[0].mxu0
        %v730 = vadd.f32 %v666, %v729
        %v731 = vpop.f32.mrb[0].mxu0
        %v732 = vpop.f32.mrb[0].mxu0
        %v733 = vpop.f32.mrb[0].mxu0
        %734 = vdwg.mxu0
        %v739 = vunpack.c.l.b16 %v643
        %v740 = vunpack.c.l.b16 %v644
        %v741 = vunpack.c.l.b16 %v645
        %v742 = vunpack.c.l.b16 %v646
        %v743 = vpack.c.b16 %v740, %v739
        %v744 = vpack.c.b16 %v742, %v741
        %747 = vmatprep.subr.bf16.mxu0 0
        %748 = vmatpush1.bf16.msra.mxu0 %v743
        %749 = vmatprep.subr.bf16.mxu0 0
        %750 = vmatpush1.bf16.msra.mxu0 %v744
        %751 = vmatprep.subr.bf16.mxu0 0
        %752 = vmatpush1.bf16.msra.mxu0 0
        %753 = vmatprep.subr.bf16.mxu0 0
        %754 = vmatpush1.bf16.msra.mxu0 0
        %755 = vmatprep.subr.bf16.mxu0 0
        %756 = vmatpush1.bf16.msra.mxu0 0
        %757 = vmatprep.subr.bf16.mxu0 0
        %758 = vmatpush1.bf16.msra.mxu0 0
        %759 = vmatprep.subr.bf16.mxu0 0
        %760 = vmatpush1.bf16.msra.mxu0 0
        %761 = vmatprep.subr.bf16.mxu0 0
        %762 = vmatpush1.bf16.msra.mxu0 0
        %763 = vmatprep.subr.bf16.mxu0 0
        %764 = vmatpush1.bf16.msra.mxu0 0
        %765 = vmatprep.subr.bf16.mxu0 0
        %766 = vmatpush1.bf16.msra.mxu0 0
        %767 = vmatprep.subr.bf16.mxu0 0
        %768 = vmatpush1.bf16.msra.mxu0 0
        %769 = vmatprep.subr.bf16.mxu0 0
        %770 = vmatpush1.bf16.msra.mxu0 0
        %771 = vmatprep.subr.bf16.mxu0 0
        %772 = vmatpush1.bf16.msra.mxu0 0
        %773 = vmatprep.subr.bf16.mxu0 0
        %774 = vmatpush1.bf16.msra.mxu0 0
        %775 = vmatprep.subr.bf16.mxu0 0
        %776 = vmatpush1.bf16.msra.mxu0 0
        %777 = vmatprep.subr.bf16.mxu0 0
        %778 = vmatpush1.bf16.msra.mxu0 0
        %779 = vmatprep.mubr.bf16.mxu0 0
        %780 = vmatmul.mubr.bf16.gmra.mrb[0].mxu0 %v441
        %v781 = vpop.f32.mrb[0].mxu0
        %v782 = vadd.f32 %v670, %v781
        %v783 = vpop.f32.mrb[0].mxu0
        %v784 = vpop.f32.mrb[0].mxu0
        %v785 = vpop.f32.mrb[0].mxu0
        %786 = vdwg.mxu0
        %v791 = vunpack.c.l.b16 %v647
        %v792 = vunpack.c.l.b16 %v648
        %v793 = vunpack.c.l.b16 %v649
        %v794 = vunpack.c.l.b16 %v650
        %v795 = vpack.c.b16 %v792, %v791
        %v796 = vpack.c.b16 %v794, %v793
        %799 = vmatprep.subr.bf16.mxu0 0
        %800 = vmatpush1.bf16.msra.mxu0 %v795
        %801 = vmatprep.subr.bf16.mxu0 0
        %802 = vmatpush1.bf16.msra.mxu0 %v796
        %803 = vmatprep.subr.bf16.mxu0 0
        %804 = vmatpush1.bf16.msra.mxu0 0
        %805 = vmatprep.subr.bf16.mxu0 0
        %806 = vmatpush1.bf16.msra.mxu0 0
        %807 = vmatprep.subr.bf16.mxu0 0
        %808 = vmatpush1.bf16.msra.mxu0 0
        %809 = vmatprep.subr.bf16.mxu0 0
        %810 = vmatpush1.bf16.msra.mxu0 0
        %811 = vmatprep.subr.bf16.mxu0 0
        %812 = vmatpush1.bf16.msra.mxu0 0
        %813 = vmatprep.subr.bf16.mxu0 0
        %814 = vmatpush1.bf16.msra.mxu0 0
        %815 = vmatprep.subr.bf16.mxu0 0
        %816 = vmatpush1.bf16.msra.mxu0 0
        %817 = vmatprep.subr.bf16.mxu0 0
        %818 = vmatpush1.bf16.msra.mxu0 0
        %819 = vmatprep.subr.bf16.mxu0 0
        %820 = vmatpush1.bf16.msra.mxu0 0
        %821 = vmatprep.subr.bf16.mxu0 0
        %822 = vmatpush1.bf16.msra.mxu0 0
        %823 = vmatprep.subr.bf16.mxu0 0
        %824 = vmatpush1.bf16.msra.mxu0 0
        %825 = vmatprep.subr.bf16.mxu0 0
        %826 = vmatpush1.bf16.msra.mxu0 0
        %827 = vmatprep.subr.bf16.mxu0 0
        %828 = vmatpush1.bf16.msra.mxu0 0
        %829 = vmatprep.subr.bf16.mxu0 0
        %830 = vmatpush1.bf16.msra.mxu0 0
        %831 = vmatprep.mubr.bf16.mxu0 0
        %832 = vmatmul.mubr.bf16.gmra.mrb[0].mxu0 %v441
        %v833 = vpop.f32.mrb[0].mxu0
        %v834 = vadd.f32 %v674, %v833
        %v835 = vpop.f32.mrb[0].mxu0
        %v836 = vpop.f32.mrb[0].mxu0
        %v837 = vpop.f32.mrb[0].mxu0
        %838 = vdwg.mxu0
        %v843 = vunpack.c.l.b16 %v651
        %v844 = vunpack.c.l.b16 %v652
        %v845 = vunpack.c.l.b16 %v653
        %v846 = vunpack.c.l.b16 %v654
        %v847 = vpack.c.b16 %v844, %v843
        %v848 = vpack.c.b16 %v846, %v845
        %851 = vmatprep.subr.bf16.mxu0 0
        %852 = vmatpush1.bf16.msra.mxu0 %v847
        %853 = vmatprep.subr.bf16.mxu0 0
        %854 = vmatpush1.bf16.msra.mxu0 %v848
        %855 = vmatprep.subr.bf16.mxu0 0
        %856 = vmatpush1.bf16.msra.mxu0 0
        %857 = vmatprep.subr.bf16.mxu0 0
        %858 = vmatpush1.bf16.msra.mxu0 0
        %859 = vmatprep.subr.bf16.mxu0 0
        %860 = vmatpush1.bf16.msra.mxu0 0
        %861 = vmatprep.subr.bf16.mxu0 0
        %862 = vmatpush1.bf16.msra.mxu0 0
        %863 = vmatprep.subr.bf16.mxu0 0
        %864 = vmatpush1.bf16.msra.mxu0 0
        %865 = vmatprep.subr.bf16.mxu0 0
        %866 = vmatpush1.bf16.msra.mxu0 0
        %867 = vmatprep.subr.bf16.mxu0 0
        %868 = vmatpush1.bf16.msra.mxu0 0
        %869 = vmatprep.subr.bf16.mxu0 0
        %870 = vmatpush1.bf16.msra.mxu0 0
        %871 = vmatprep.subr.bf16.mxu0 0
        %872 = vmatpush1.bf16.msra.mxu0 0
        %873 = vmatprep.subr.bf16.mxu0 0
        %874 = vmatpush1.bf16.msra.mxu0 0
        %875 = vmatprep.subr.bf16.mxu0 0
        %876 = vmatpush1.bf16.msra.mxu0 0
        %877 = vmatprep.subr.bf16.mxu0 0
        %878 = vmatpush1.bf16.msra.mxu0 0
        %879 = vmatprep.subr.bf16.mxu0 0
        %880 = vmatpush1.bf16.msra.mxu0 0
        %881 = vmatprep.subr.bf16.mxu0 0
        %882 = vmatpush1.bf16.msra.mxu0 0
        %883 = vmatprep.mubr.bf16.mxu0 0
        %884 = vmatmul.mubr.bf16.gmra.mrb[0].mxu0 %v441
        %v885 = vpop.f32.mrb[0].mxu0
        %v886 = vadd.f32 %v678, %v885
        %v887 = vpop.f32.mrb[0].mxu0
        %v888 = vpop.f32.mrb[0].mxu0
        %v889 = vpop.f32.mrb[0].mxu0
        %890 = vdwg.mxu0
        %v891 = vld [vmem:[%s3] sm:$0xf]
        %v892 = vld [vmem:[%s3 + $0x4] sm:$0xf]
        %v893 = vld [vmem:[%s3 + $0x8] sm:$0xf]
        %v894 = vld [vmem:[%s3 + $0xc] sm:$0xf]
        %v895 = vld [vmem:[%s3 + $0x10] sm:$0xf]
        %v896 = vld [vmem:[%s3 + $0x14] sm:$0xf]
        %v897 = vld [vmem:[%s3 + $0x18] sm:$0xf]
        %v898 = vld [vmem:[%s3 + $0x1c] sm:$0xf]
        %v899 = vld [vmem:[%s3 + $0x20] sm:$0xf]
        %v900 = vld [vmem:[%s3 + $0x24] sm:$0xf]
        %v901 = vld [vmem:[%s3 + $0x28] sm:$0xf]
        %v902 = vld [vmem:[%s3 + $0x2c] sm:$0xf]
        %v903 = vld [vmem:[%s3 + $0x30] sm:$0xf]
        %v904 = vld [vmem:[%s3 + $0x34] sm:$0xf]
        %v905 = vld [vmem:[%s3 + $0x38] sm:$0xf]
        %v906 = vld [vmem:[%s3 + $0x3c] sm:$0xf]
        %v907 = vld [vmem:[%s6] sm:$0x1]
        %v908 = vld [vmem:[%s6 + $0x1] sm:$0x1]
        %v909 = vld [vmem:[%s6 + $0x2] sm:$0x1]
        %v910 = vld [vmem:[%s6 + $0x3] sm:$0x1]
        %v915 = vlaneseq
        %v916 = vshrl.u32 %v915, 7
        %v917 = vsub.s32 0, %v916
        %v918 = vrot.slane %v907, %v917
        %v919 = vlaneseq
        %v920 = vshrl.u32 %v919, 7
        %v921 = vsub.s32 0, %v920
        %v922 = vrot.slane %v908, %v921
        %v923 = vlaneseq
        %v924 = vshrl.u32 %v923, 7
        %v925 = vsub.s32 0, %v924
        %v926 = vrot.slane %v909, %v925
        %v927 = vlaneseq
        %v928 = vshrl.u32 %v927, 7
        %v929 = vsub.s32 0, %v928
        %v930 = vrot.slane %v910, %v929
        %v939 = vunpack.c.l.b16 %v891
        %v940 = vunpack.c.l.b16 %v892
        %v941 = vunpack.c.l.b16 %v893
        %v942 = vunpack.c.l.b16 %v894
        %v943 = vpack.c.b16 %v940, %v939
        %v944 = vpack.c.b16 %v942, %v941
        %947 = vmatprep.subr.bf16.mxu0 0
        %948 = vmatpush1.bf16.msra.mxu0 %v943
        %949 = vmatprep.subr.bf16.mxu0 0
        %950 = vmatpush1.bf16.msra.mxu0 %v944
        %951 = vmatprep.subr.bf16.mxu0 0
        %952 = vmatpush1.bf16.msra.mxu0 0
        %953 = vmatprep.subr.bf16.mxu0 0
        %954 = vmatpush1.bf16.msra.mxu0 0
        %955 = vmatprep.subr.bf16.mxu0 0
        %956 = vmatpush1.bf16.msra.mxu0 0
        %957 = vmatprep.subr.bf16.mxu0 0
        %958 = vmatpush1.bf16.msra.mxu0 0
        %959 = vmatprep.subr.bf16.mxu0 0
        %960 = vmatpush1.bf16.msra.mxu0 0
        %961 = vmatprep.subr.bf16.mxu0 0
        %962 = vmatpush1.bf16.msra.mxu0 0
        %963 = vmatprep.subr.bf16.mxu0 0
        %964 = vmatpush1.bf16.msra.mxu0 0
        %965 = vmatprep.subr.bf16.mxu0 0
        %966 = vmatpush1.bf16.msra.mxu0 0
        %967 = vmatprep.subr.bf16.mxu0 0
        %968 = vmatpush1.bf16.msra.mxu0 0
        %969 = vmatprep.subr.bf16.mxu0 0
        %970 = vmatpush1.bf16.msra.mxu0 0
        %971 = vmatprep.subr.bf16.mxu0 0
        %972 = vmatpush1.bf16.msra.mxu0 0
        %973 = vmatprep.subr.bf16.mxu0 0
        %974 = vmatpush1.bf16.msra.mxu0 0
        %975 = vmatprep.subr.bf16.mxu0 0
        %976 = vmatpush1.bf16.msra.mxu0 0
        %977 = vmatprep.subr.bf16.mxu0 0
        %978 = vmatpush1.bf16.msra.mxu0 0
        %979 = vmatprep.mubr.bf16.mxu0 0
        %980 = vmatmul.mubr.bf16.gmra.mrb[0].mxu0 %v441
        %v981 = vpop.f32.mrb[0].mxu0
        %v982 = vadd.f32 %v918, %v981
        %v983 = vpop.f32.mrb[0].mxu0
        %v984 = vpop.f32.mrb[0].mxu0
        %v985 = vpop.f32.mrb[0].mxu0
        %986 = vdwg.mxu0
        %v991 = vunpack.c.l.b16 %v895
        %v992 = vunpack.c.l.b16 %v896
        %v993 = vunpack.c.l.b16 %v897
        %v994 = vunpack.c.l.b16 %v898
        %v995 = vpack.c.b16 %v992, %v991
        %v996 = vpack.c.b16 %v994, %v993
        %999 = vmatprep.subr.bf16.mxu0 0
        %1000 = vmatpush1.bf16.msra.mxu0 %v995
        %1001 = vmatprep.subr.bf16.mxu0 0
        %1002 = vmatpush1.bf16.msra.mxu0 %v996
        %1003 = vmatprep.subr.bf16.mxu0 0
        %1004 = vmatpush1.bf16.msra.mxu0 0
        %1005 = vmatprep.subr.bf16.mxu0 0
        %1006 = vmatpush1.bf16.msra.mxu0 0
        %1007 = vmatprep.subr.bf16.mxu0 0
        %1008 = vmatpush1.bf16.msra.mxu0 0
        %1009 = vmatprep.subr.bf16.mxu0 0
        %1010 = vmatpush1.bf16.msra.mxu0 0
        %1011 = vmatprep.subr.bf16.mxu0 0
        %1012 = vmatpush1.bf16.msra.mxu0 0
        %1013 = vmatprep.subr.bf16.mxu0 0
        %1014 = vmatpush1.bf16.msra.mxu0 0
        %1015 = vmatprep.subr.bf16.mxu0 0
        %1016 = vmatpush1.bf16.msra.mxu0 0
        %1017 = vmatprep.subr.bf16.mxu0 0
        %1018 = vmatpush1.bf16.msra.mxu0 0
        %1019 = vmatprep.subr.bf16.mxu0 0
        %1020 = vmatpush1.bf16.msra.mxu0 0
        %1021 = vmatprep.subr.bf16.mxu0 0
        %1022 = vmatpush1.bf16.msra.mxu0 0
        %1023 = vmatprep.subr.bf16.mxu0 0
        %1024 = vmatpush1.bf16.msra.mxu0 0
        %1025 = vmatprep.subr.bf16.mxu0 0
        %1026 = vmatpush1.bf16.msra.mxu0 0
        %1027 = vmatprep.subr.bf16.mxu0 0
        %1028 = vmatpush1.bf16.msra.mxu0 0
        %1029 = vmatprep.subr.bf16.mxu0 0
        %1030 = vmatpush1.bf16.msra.mxu0 0
        %1031 = vmatprep.mubr.bf16.mxu0 0
        %1032 = vmatmul.mubr.bf16.gmra.mrb[0].mxu0 %v441
        %v1033 = vpop.f32.mrb[0].mxu0
        %v1034 = vadd.f32 %v922, %v1033
        %v1035 = vpop.f32.mrb[0].mxu0
        %v1036 = vpop.f32.mrb[0].mxu0
        %v1037 = vpop.f32.mrb[0].mxu0
        %1038 = vdwg.mxu0
        %v1043 = vunpack.c.l.b16 %v899
        %v1044 = vunpack.c.l.b16 %v900
        %v1045 = vunpack.c.l.b16 %v901
        %v1046 = vunpack.c.l.b16 %v902
        %v1047 = vpack.c.b16 %v1044, %v1043
        %v1048 = vpack.c.b16 %v1046, %v1045
        %1051 = vmatprep.subr.bf16.mxu0 0
        %1052 = vmatpush1.bf16.msra.mxu0 %v1047
        %1053 = vmatprep.subr.bf16.mxu0 0
        %1054 = vmatpush1.bf16.msra.mxu0 %v1048
        %1055 = vmatprep.subr.bf16.mxu0 0
        %1056 = vmatpush1.bf16.msra.mxu0 0
        %1057 = vmatprep.subr.bf16.mxu0 0
        %1058 = vmatpush1.bf16.msra.mxu0 0
        %1059 = vmatprep.subr.bf16.mxu0 0
        %1060 = vmatpush1.bf16.msra.mxu0 0
        %1061 = vmatprep.subr.bf16.mxu0 0
        %1062 = vmatpush1.bf16.msra.mxu0 0
        %1063 = vmatprep.subr.bf16.mxu0 0
        %1064 = vmatpush1.bf16.msra.mxu0 0
        %1065 = vmatprep.subr.bf16.mxu0 0
        %1066 = vmatpush1.bf16.msra.mxu0 0
        %1067 = vmatprep.subr.bf16.mxu0 0
        %1068 = vmatpush1.bf16.msra.mxu0 0
        %1069 = vmatprep.subr.bf16.mxu0 0
        %1070 = vmatpush1.bf16.msra.mxu0 0
        %1071 = vmatprep.subr.bf16.mxu0 0
        %1072 = vmatpush1.bf16.msra.mxu0 0
        %1073 = vmatprep.subr.bf16.mxu0 0
        %1074 = vmatpush1.bf16.msra.mxu0 0
        %1075 = vmatprep.subr.bf16.mxu0 0
        %1076 = vmatpush1.bf16.msra.mxu0 0
        %1077 = vmatprep.subr.bf16.mxu0 0
        %1078 = vmatpush1.bf16.msra.mxu0 0
        %1079 = vmatprep.subr.bf16.mxu0 0
        %1080 = vmatpush1.bf16.msra.mxu0 0
        %1081 = vmatprep.subr.bf16.mxu0 0
        %1082 = vmatpush1.bf16.msra.mxu0 0
        %1083 = vmatprep.mubr.bf16.mxu0 0
        %1084 = vmatmul.mubr.bf16.gmra.mrb[0].mxu0 %v441
        %v1085 = vpop.f32.mrb[0].mxu0
        %v1086 = vadd.f32 %v926, %v1085
        %v1087 = vpop.f32.mrb[0].mxu0
        %v1088 = vpop.f32.mrb[0].mxu0
        %v1089 = vpop.f32.mrb[0].mxu0
        %1090 = vdwg.mxu0
        %v1095 = vunpack.c.l.b16 %v903
        %v1096 = vunpack.c.l.b16 %v904
        %v1097 = vunpack.c.l.b16 %v905
        %v1098 = vunpack.c.l.b16 %v906
        %v1099 = vpack.c.b16 %v1096, %v1095
        %v1100 = vpack.c.b16 %v1098, %v1097
        %1103 = vmatprep.subr.bf16.mxu0 0
        %1104 = vmatpush1.bf16.msra.mxu0 %v1099
        %1105 = vmatprep.subr.bf16.mxu0 0
        %1106 = vmatpush1.bf16.msra.mxu0 %v1100
        %1107 = vmatprep.subr.bf16.mxu0 0
        %1108 = vmatpush1.bf16.msra.mxu0 0
        %1109 = vmatprep.subr.bf16.mxu0 0
        %1110 = vmatpush1.bf16.msra.mxu0 0
        %1111 = vmatprep.subr.bf16.mxu0 0
        %1112 = vmatpush1.bf16.msra.mxu0 0
        %1113 = vmatprep.subr.bf16.mxu0 0
        %1114 = vmatpush1.bf16.msra.mxu0 0
        %1115 = vmatprep.subr.bf16.mxu0 0
        %1116 = vmatpush1.bf16.msra.mxu0 0
        %1117 = vmatprep.subr.bf16.mxu0 0
        %1118 = vmatpush1.bf16.msra.mxu0 0
        %1119 = vmatprep.subr.bf16.mxu0 0
        %1120 = vmatpush1.bf16.msra.mxu0 0
        %1121 = vmatprep.subr.bf16.mxu0 0
        %1122 = vmatpush1.bf16.msra.mxu0 0
        %1123 = vmatprep.subr.bf16.mxu0 0
        %1124 = vmatpush1.bf16.msra.mxu0 0
        %1125 = vmatprep.subr.bf16.mxu0 0
        %1126 = vmatpush1.bf16.msra.mxu0 0
        %1127 = vmatprep.subr.bf16.mxu0 0
        %1128 = vmatpush1.bf16.msra.mxu0 0
        %1129 = vmatprep.subr.bf16.mxu0 0
        %1130 = vmatpush1.bf16.msra.mxu0 0
        %1131 = vmatprep.subr.bf16.mxu0 0
        %1132 = vmatpush1.bf16.msra.mxu0 0
        %1133 = vmatprep.subr.bf16.mxu0 0
        %1134 = vmatpush1.bf16.msra.mxu0 0
        %1135 = vmatprep.mubr.bf16.mxu0 0
        %1136 = vmatmul.mubr.bf16.gmra.mrb[0].mxu0 %v441
        %v1137 = vpop.f32.mrb[0].mxu0
        %v1138 = vadd.f32 %v930, %v1137
        %v1139 = vpop.f32.mrb[0].mxu0
        %v1140 = vpop.f32.mrb[0].mxu0
        %v1141 = vpop.f32.mrb[0].mxu0
        %1142 = vdwg.mxu0
        %v1143 = vpack.c.bf16 %v478, %v478
        %v1144 = vpack.c.bf16 %v530, %v530
        %v1145 = vpack.c.bf16 %v582, %v582
        %v1146 = vpack.c.bf16 %v634, %v634
        %v1147 = vpack.c.bf16 %v730, %v730
        %v1148 = vpack.c.bf16 %v782, %v782
        %v1149 = vpack.c.bf16 %v834, %v834
        %v1150 = vpack.c.bf16 %v886, %v886
        %vm1151 = vcmask 64512
        %v1153 = vsel %vm1151, %v1143, 0
        %v1156 = vsel %vm1151, %v1147, 0
        %1158 = vmatprep.subr.bf16.mxu0 0
        %1159 = vmatpush1.bf16.xpose.msra.mxu0 %v1156
        %1160 = vmatprep.subr.bf16.mxu0 0
        %1161 = vmatpush1.bf16.xpose.msra.mxu0 0
        %1162 = vmatprep.subr.bf16.mxu0 0
        %1163 = vmatpush1.bf16.xpose.msra.mxu0 0
        %1164 = vmatprep.subr.bf16.mxu0 0
        %1165 = vmatpush1.bf16.xpose.msra.mxu0 0
        %1166 = vmatprep.subr.bf16.mxu0 0
        %1167 = vmatpush1.bf16.xpose.msra.mxu0 0
        %1168 = vmatprep.subr.bf16.mxu0 0
        %1169 = vmatpush1.bf16.xpose.msra.mxu0 0
        %1170 = vmatprep.subr.bf16.mxu0 0
        %1171 = vmatpush1.bf16.xpose.msra.mxu0 0
        %1172 = vmatprep.subr.bf16.mxu0 0
        %1173 = vmatpush1.bf16.xpose.msra.mxu0 0
        %1174 = vmatprep.subr.bf16.mxu0 0
        %1175 = vmatpush1.bf16.xpose.msra.mxu0 0
        %1176 = vmatprep.subr.bf16.mxu0 0
        %1177 = vmatpush1.bf16.xpose.msra.mxu0 0
        %1178 = vmatprep.subr.bf16.mxu0 0
        %1179 = vmatpush1.bf16.xpose.msra.mxu0 0
        %1180 = vmatprep.subr.bf16.mxu0 0
        %1181 = vmatpush1.bf16.xpose.msra.mxu0 0
        %1182 = vmatprep.subr.bf16.mxu0 0
        %1183 = vmatpush1.bf16.xpose.msra.mxu0 0
        %1184 = vmatprep.subr.bf16.mxu0 0
        %1185 = vmatpush1.bf16.xpose.msra.mxu0 0
        %1186 = vmatprep.subr.bf16.mxu0 0
        %1187 = vmatpush1.bf16.xpose.msra.mxu0 0
        %1188 = vmatprep.subr.bf16.mxu0 0
        %1189 = vmatpush1.bf16.xpose.msra.mxu0 0
        %1190 = vmatprep.mubr.bf16.mxu0 0
        %1191 = vmatmul.mubr.bf16.gmra.mrb[0].mxu0 %v1153
        %v1192 = vpop.f32.mrb[0].mxu0
        %v1193 = vadd.f32 0.0, %v1192
        %v1194 = vpop.f32.mrb[0].mxu0
        %v1195 = vpop.f32.mrb[0].mxu0
        %v1196 = vpop.f32.mrb[0].mxu0
        %1197 = vdwg.mxu0
        %v1199 = vsel %vm1151, %v1144, 0
        %v1202 = vsel %vm1151, %v1148, 0
        %1204 = vmatprep.subr.bf16.mxu0 0
        %1205 = vmatpush1.bf16.xpose.msra.mxu0 %v1202
        %1206 = vmatprep.subr.bf16.mxu0 0
        %1207 = vmatpush1.bf16.xpose.msra.mxu0 0
        %1208 = vmatprep.subr.bf16.mxu0 0
        %1209 = vmatpush1.bf16.xpose.msra.mxu0 0
        %1210 = vmatprep.subr.bf16.mxu0 0
        %1211 = vmatpush1.bf16.xpose.msra.mxu0 0
        %1212 = vmatprep.subr.bf16.mxu0 0
        %1213 = vmatpush1.bf16.xpose.msra.mxu0 0
        %1214 = vmatprep.subr.bf16.mxu0 0
        %1215 = vmatpush1.bf16.xpose.msra.mxu0 0
        %1216 = vmatprep.subr.bf16.mxu0 0
        %1217 = vmatpush1.bf16.xpose.msra.mxu0 0
        %1218 = vmatprep.subr.bf16.mxu0 0
        %1219 = vmatpush1.bf16.xpose.msra.mxu0 0
        %1220 = vmatprep.subr.bf16.mxu0 0
        %1221 = vmatpush1.bf16.xpose.msra.mxu0 0
        %1222 = vmatprep.subr.bf16.mxu0 0
        %1223 = vmatpush1.bf16.xpose.msra.mxu0 0
        %1224 = vmatprep.subr.bf16.mxu0 0
        %1225 = vmatpush1.bf16.xpose.msra.mxu0 0
        %1226 = vmatprep.subr.bf16.mxu0 0
        %1227 = vmatpush1.bf16.xpose.msra.mxu0 0
        %1228 = vmatprep.subr.bf16.mxu0 0
        %1229 = vmatpush1.bf16.xpose.msra.mxu0 0
        %1230 = vmatprep.subr.bf16.mxu0 0
        %1231 = vmatpush1.bf16.xpose.msra.mxu0 0
        %1232 = vmatprep.subr.bf16.mxu0 0
        %1233 = vmatpush1.bf16.xpose.msra.mxu0 0
        %1234 = vmatprep.subr.bf16.mxu0 0
        %1235 = vmatpush1.bf16.xpose.msra.mxu0 0
        %1236 = vmatprep.mubr.bf16.mxu0 0
        %1237 = vmatmul.mubr.bf16.gmra.mrb[0].mxu0 %v1199
        %v1238 = vpop.f32.mrb[0].mxu0
        %v1239 = vadd.f32 0.0, %v1238
        %v1240 = vpop.f32.mrb[0].mxu0
        %v1241 = vpop.f32.mrb[0].mxu0
        %v1242 = vpop.f32.mrb[0].mxu0
        %1243 = vdwg.mxu0
        %v1245 = vsel %vm1151, %v1145, 0
        %v1248 = vsel %vm1151, %v1149, 0
        %1250 = vmatprep.subr.bf16.mxu0 0
        %1251 = vmatpush1.bf16.xpose.msra.mxu0 %v1248
        %1252 = vmatprep.subr.bf16.mxu0 0
        %1253 = vmatpush1.bf16.xpose.msra.mxu0 0
        %1254 = vmatprep.subr.bf16.mxu0 0
        %1255 = vmatpush1.bf16.xpose.msra.mxu0 0
        %1256 = vmatprep.subr.bf16.mxu0 0
        %1257 = vmatpush1.bf16.xpose.msra.mxu0 0
        %1258 = vmatprep.subr.bf16.mxu0 0
        %1259 = vmatpush1.bf16.xpose.msra.mxu0 0
        %1260 = vmatprep.subr.bf16.mxu0 0
        %1261 = vmatpush1.bf16.xpose.msra.mxu0 0
        %1262 = vmatprep.subr.bf16.mxu0 0
        %1263 = vmatpush1.bf16.xpose.msra.mxu0 0
        %1264 = vmatprep.subr.bf16.mxu0 0
        %1265 = vmatpush1.bf16.xpose.msra.mxu0 0
        %1266 = vmatprep.subr.bf16.mxu0 0
        %1267 = vmatpush1.bf16.xpose.msra.mxu0 0
        %1268 = vmatprep.subr.bf16.mxu0 0
        %1269 = vmatpush1.bf16.xpose.msra.mxu0 0
        %1270 = vmatprep.subr.bf16.mxu0 0
        %1271 = vmatpush1.bf16.xpose.msra.mxu0 0
        %1272 = vmatprep.subr.bf16.mxu0 0
        %1273 = vmatpush1.bf16.xpose.msra.mxu0 0
        %1274 = vmatprep.subr.bf16.mxu0 0
        %1275 = vmatpush1.bf16.xpose.msra.mxu0 0
        %1276 = vmatprep.subr.bf16.mxu0 0
        %1277 = vmatpush1.bf16.xpose.msra.mxu0 0
        %1278 = vmatprep.subr.bf16.mxu0 0
        %1279 = vmatpush1.bf16.xpose.msra.mxu0 0
        %1280 = vmatprep.subr.bf16.mxu0 0
        %1281 = vmatpush1.bf16.xpose.msra.mxu0 0
        %1282 = vmatprep.mubr.bf16.mxu0 0
        %1283 = vmatmul.mubr.bf16.gmra.mrb[0].mxu0 %v1245
        %v1284 = vpop.f32.mrb[0].mxu0
        %v1285 = vadd.f32 0.0, %v1284
        %v1286 = vpop.f32.mrb[0].mxu0
        %v1287 = vpop.f32.mrb[0].mxu0
        %v1288 = vpop.f32.mrb[0].mxu0
        %1289 = vdwg.mxu0
        %v1291 = vsel %vm1151, %v1146, 0
        %v1294 = vsel %vm1151, %v1150, 0
        %1296 = vmatprep.subr.bf16.mxu0 0
        %1297 = vmatpush1.bf16.xpose.msra.mxu0 %v1294
        %1298 = vmatprep.subr.bf16.mxu0 0
        %1299 = vmatpush1.bf16.xpose.msra.mxu0 0
        %1300 = vmatprep.subr.bf16.mxu0 0
        %1301 = vmatpush1.bf16.xpose.msra.mxu0 0
        %1302 = vmatprep.subr.bf16.mxu0 0
        %1303 = vmatpush1.bf16.xpose.msra.mxu0 0
        %1304 = vmatprep.subr.bf16.mxu0 0
        %1305 = vmatpush1.bf16.xpose.msra.mxu0 0
        %1306 = vmatprep.subr.bf16.mxu0 0
        %1307 = vmatpush1.bf16.xpose.msra.mxu0 0
        %1308 = vmatprep.subr.bf16.mxu0 0
        %1309 = vmatpush1.bf16.xpose.msra.mxu0 0
        %1310 = vmatprep.subr.bf16.mxu0 0
        %1311 = vmatpush1.bf16.xpose.msra.mxu0 0
        %1312 = vmatprep.subr.bf16.mxu0 0
        %1313 = vmatpush1.bf16.xpose.msra.mxu0 0
        %1314 = vmatprep.subr.bf16.mxu0 0
        %1315 = vmatpush1.bf16.xpose.msra.mxu0 0
        %1316 = vmatprep.subr.bf16.mxu0 0
        %1317 = vmatpush1.bf16.xpose.msra.mxu0 0
        %1318 = vmatprep.subr.bf16.mxu0 0
        %1319 = vmatpush1.bf16.xpose.msra.mxu0 0
        %1320 = vmatprep.subr.bf16.mxu0 0
        %1321 = vmatpush1.bf16.xpose.msra.mxu0 0
        %1322 = vmatprep.subr.bf16.mxu0 0
        %1323 = vmatpush1.bf16.xpose.msra.mxu0 0
        %1324 = vmatprep.subr.bf16.mxu0 0
        %1325 = vmatpush1.bf16.xpose.msra.mxu0 0
        %1326 = vmatprep.subr.bf16.mxu0 0
        %1327 = vmatpush1.bf16.xpose.msra.mxu0 0
        %1328 = vmatprep.mubr.bf16.mxu0 0
        %1329 = vmatmul.mubr.bf16.gmra.mrb[0].mxu0 %v1291
        %v1330 = vpop.f32.mrb[0].mxu0
        %v1331 = vadd.f32 0.0, %v1330
        %v1332 = vpop.f32.mrb[0].mxu0
        %v1333 = vpop.f32.mrb[0].mxu0
        %v1334 = vpop.f32.mrb[0].mxu0
        %1335 = vdwg.mxu0
        %v1336 = vlaneseq
        %v1337 = vshrl.u32 %v1336, 7
        %v1338 = vlaneseq
        %v1339 = vand.u32 %v1338, 127
        %vm1340 = vcmp.le.s32.totalorder %v1339, %v1337
        %v1341 = vsel %vm1340, 1, 0
        %vm1342 = vcmp.eq.s32.totalorder %v1341, 1
        %v1343 = vsel %vm1342, %v1193, -1e+30
        %v1344 = vsel %vm1342, %v1239, -1e+30
        %v1345 = vsel %vm1342, %v1285, -1e+30
        %v1346 = vsel %vm1342, %v1331, -1e+30
        %v1347 = vsel %vm1151, %v1343, -inf
        %1348 = vmax.xlane.f32.xlu0 %v1347
        %v1349 = vpop.xlane.xlu0 %1348
        %v1350 = vsel %vm1151, %v1344, -inf
        %1351 = vmax.xlane.f32.xlu0 %v1350
        %v1352 = vpop.xlane.xlu0 %1351
        %v1353 = vsel %vm1151, %v1345, -inf
        %1354 = vmax.xlane.f32.xlu0 %v1353
        %v1355 = vpop.xlane.xlu0 %1354
        %v1356 = vsel %vm1151, %v1346, -inf
        %1357 = vmax.xlane.f32.xlu0 %v1356
        %v1358 = vpop.xlane.xlu0 %1357
        %v1359 = vsub.f32 %v1343, %v1349
        %v1360 = vsub.f32 %v1344, %v1352
        %v1361 = vsub.f32 %v1345, %v1355
        %v1362 = vsub.f32 %v1346, %v1358
        %v1363 = vmul.f32 %v1359, 1.442695
        %v1364 = vpow.pop %v1363
        %v1365 = vmul.f32 %v1360, 1.442695
        %v1366 = vpow.pop %v1365
        %v1367 = vmul.f32 %v1361, 1.442695
        %v1368 = vpow.pop %v1367
        %v1369 = vmul.f32 %v1362, 1.442695
        %v1370 = vpow.pop %v1369
        %v1371 = vsel %vm1151, %v1364, 0.0
        %1372 = vadd.xlane.f32.xlu0 %v1371
        %v1373 = vpop.xlane.xlu0 %1372
        %v1374 = vsel %vm1151, %v1366, 0.0
        %1375 = vadd.xlane.f32.xlu0 %v1374
        %v1376 = vpop.xlane.xlu0 %1375
        %v1377 = vsel %vm1151, %v1368, 0.0
        %1378 = vadd.xlane.f32.xlu0 %v1377
        %v1379 = vpop.xlane.xlu0 %1378
        %v1380 = vsel %vm1151, %v1370, 0.0
        %1381 = vadd.xlane.f32.xlu0 %v1380
        %v1382 = vpop.xlane.xlu0 %1381
        %v1383 = vrcp.pop %v1373
        %v1384 = vrcp.pop %v1376
        %v1385 = vrcp.pop %v1379
        %v1386 = vrcp.pop %v1382
        %v1387 = vmul.f32 %v1364, %v1383
        %v1388 = vmul.f32 %v1366, %v1384
        %v1389 = vmul.f32 %v1368, %v1385
        %v1390 = vmul.f32 %v1370, %v1386
        %v1391 = vpack.c.bf16 %v1387, %v1387
        %v1392 = vpack.c.bf16 %v1388, %v1388
        %v1393 = vpack.c.bf16 %v1389, %v1389
        %v1394 = vpack.c.bf16 %v1390, %v1390
        %v1395 = vpack.c.bf16 %v982, %v982
        %v1396 = vpack.c.bf16 %v1034, %v1034
        %v1397 = vpack.c.bf16 %v1086, %v1086
        %v1398 = vpack.c.bf16 %v1138, %v1138
        %v1400 = vsel %vm1151, %v1391, 0
        %vm1402 = vcmask 1043456
        %v1404 = vsel %vm1402, %v1395, 0
        %1406 = vmatprep.subr.bf16.mxu0 0
        %1407 = vmatpush1.bf16.msra.mxu0 %v1404
        %1408 = vmatprep.subr.bf16.mxu0 0
        %1409 = vmatpush1.bf16.msra.mxu0 0
        %1410 = vmatprep.subr.bf16.mxu0 0
        %1411 = vmatpush1.bf16.msra.mxu0 0
        %1412 = vmatprep.subr.bf16.mxu0 0
        %1413 = vmatpush1.bf16.msra.mxu0 0
        %1414 = vmatprep.subr.bf16.mxu0 0
        %1415 = vmatpush1.bf16.msra.mxu0 0
        %1416 = vmatprep.subr.bf16.mxu0 0
        %1417 = vmatpush1.bf16.msra.mxu0 0
        %1418 = vmatprep.subr.bf16.mxu0 0
        %1419 = vmatpush1.bf16.msra.mxu0 0
        %1420 = vmatprep.subr.bf16.mxu0 0
        %1421 = vmatpush1.bf16.msra.mxu0 0
        %1422 = vmatprep.subr.bf16.mxu0 0
        %1423 = vmatpush1.bf16.msra.mxu0 0
        %1424 = vmatprep.subr.bf16.mxu0 0
        %1425 = vmatpush1.bf16.msra.mxu0 0
        %1426 = vmatprep.subr.bf16.mxu0 0
        %1427 = vmatpush1.bf16.msra.mxu0 0
        %1428 = vmatprep.subr.bf16.mxu0 0
        %1429 = vmatpush1.bf16.msra.mxu0 0
        %1430 = vmatprep.subr.bf16.mxu0 0
        %1431 = vmatpush1.bf16.msra.mxu0 0
        %1432 = vmatprep.subr.bf16.mxu0 0
        %1433 = vmatpush1.bf16.msra.mxu0 0
        %1434 = vmatprep.subr.bf16.mxu0 0
        %1435 = vmatpush1.bf16.msra.mxu0 0
        %1436 = vmatprep.subr.bf16.mxu0 0
        %1437 = vmatpush1.bf16.msra.mxu0 0
        %1438 = vmatprep.mubr.bf16.mxu0 0
        %1439 = vmatmul.mubr.bf16.gmra.mrb[0].mxu0 %v1400
        %v1440 = vpop.f32.mrb[0].mxu0
        %v1441 = vadd.f32 0.0, %v1440
        %v1442 = vpop.f32.mrb[0].mxu0
        %v1443 = vpop.f32.mrb[0].mxu0
        %v1444 = vpop.f32.mrb[0].mxu0
        %1445 = vdwg.mxu0
        %v1447 = vsel %vm1151, %v1392, 0
        %v1450 = vsel %vm1402, %v1396, 0
        %1452 = vmatprep.subr.bf16.mxu0 0
        %1453 = vmatpush1.bf16.msra.mxu0 %v1450
        %1454 = vmatprep.subr.bf16.mxu0 0
        %1455 = vmatpush1.bf16.msra.mxu0 0
        %1456 = vmatprep.subr.bf16.mxu0 0
        %1457 = vmatpush1.bf16.msra.mxu0 0
        %1458 = vmatprep.subr.bf16.mxu0 0
        %1459 = vmatpush1.bf16.msra.mxu0 0
        %1460 = vmatprep.subr.bf16.mxu0 0
        %1461 = vmatpush1.bf16.msra.mxu0 0
        %1462 = vmatprep.subr.bf16.mxu0 0
        %1463 = vmatpush1.bf16.msra.mxu0 0
        %1464 = vmatprep.subr.bf16.mxu0 0
        %1465 = vmatpush1.bf16.msra.mxu0 0
        %1466 = vmatprep.subr.bf16.mxu0 0
        %1467 = vmatpush1.bf16.msra.mxu0 0
        %1468 = vmatprep.subr.bf16.mxu0 0
        %1469 = vmatpush1.bf16.msra.mxu0 0
        %1470 = vmatprep.subr.bf16.mxu0 0
        %1471 = vmatpush1.bf16.msra.mxu0 0
        %1472 = vmatprep.subr.bf16.mxu0 0
        %1473 = vmatpush1.bf16.msra.mxu0 0
        %1474 = vmatprep.subr.bf16.mxu0 0
        %1475 = vmatpush1.bf16.msra.mxu0 0
        %1476 = vmatprep.subr.bf16.mxu0 0
        %1477 = vmatpush1.bf16.msra.mxu0 0
        %1478 = vmatprep.subr.bf16.mxu0 0
        %1479 = vmatpush1.bf16.msra.mxu0 0
        %1480 = vmatprep.subr.bf16.mxu0 0
        %1481 = vmatpush1.bf16.msra.mxu0 0
        %1482 = vmatprep.subr.bf16.mxu0 0
        %1483 = vmatpush1.bf16.msra.mxu0 0
        %1484 = vmatprep.mubr.bf16.mxu0 0
        %1485 = vmatmul.mubr.bf16.gmra.mrb[0].mxu0 %v1447
        %v1486 = vpop.f32.mrb[0].mxu0
        %v1487 = vadd.f32 0.0, %v1486
        %v1488 = vpop.f32.mrb[0].mxu0
        %v1489 = vpop.f32.mrb[0].mxu0
        %v1490 = vpop.f32.mrb[0].mxu0
        %1491 = vdwg.mxu0
        %v1493 = vsel %vm1151, %v1393, 0
        %v1496 = vsel %vm1402, %v1397, 0
        %1498 = vmatprep.subr.bf16.mxu0 0
        %1499 = vmatpush1.bf16.msra.mxu0 %v1496
        %1500 = vmatprep.subr.bf16.mxu0 0
        %1501 = vmatpush1.bf16.msra.mxu0 0
        %1502 = vmatprep.subr.bf16.mxu0 0
        %1503 = vmatpush1.bf16.msra.mxu0 0
        %1504 = vmatprep.subr.bf16.mxu0 0
        %1505 = vmatpush1.bf16.msra.mxu0 0
        %1506 = vmatprep.subr.bf16.mxu0 0
        %1507 = vmatpush1.bf16.msra.mxu0 0
        %1508 = vmatprep.subr.bf16.mxu0 0
        %1509 = vmatpush1.bf16.msra.mxu0 0
        %1510 = vmatprep.subr.bf16.mxu0 0
        %1511 = vmatpush1.bf16.msra.mxu0 0
        %1512 = vmatprep.subr.bf16.mxu0 0
        %1513 = vmatpush1.bf16.msra.mxu0 0
        %1514 = vmatprep.subr.bf16.mxu0 0
        %1515 = vmatpush1.bf16.msra.mxu0 0
        %1516 = vmatprep.subr.bf16.mxu0 0
        %1517 = vmatpush1.bf16.msra.mxu0 0
        %1518 = vmatprep.subr.bf16.mxu0 0
        %1519 = vmatpush1.bf16.msra.mxu0 0
        %1520 = vmatprep.subr.bf16.mxu0 0
        %1521 = vmatpush1.bf16.msra.mxu0 0
        %1522 = vmatprep.subr.bf16.mxu0 0
        %1523 = vmatpush1.bf16.msra.mxu0 0
        %1524 = vmatprep.subr.bf16.mxu0 0
        %1525 = vmatpush1.bf16.msra.mxu0 0
        %1526 = vmatprep.subr.bf16.mxu0 0
        %1527 = vmatpush1.bf16.msra.mxu0 0
        %1528 = vmatprep.subr.bf16.mxu0 0
        %1529 = vmatpush1.bf16.msra.mxu0 0
        %1530 = vmatprep.mubr.bf16.mxu0 0
        %1531 = vmatmul.mubr.bf16.gmra.mrb[0].mxu0 %v1493
        %v1532 = vpop.f32.mrb[0].mxu0
        %v1533 = vadd.f32 0.0, %v1532
        %v1534 = vpop.f32.mrb[0].mxu0
        %v1535 = vpop.f32.mrb[0].mxu0
        %v1536 = vpop.f32.mrb[0].mxu0
        %1537 = vdwg.mxu0
        %v1539 = vsel %vm1151, %v1394, 0
        %v1542 = vsel %vm1402, %v1398, 0
        %1544 = vmatprep.subr.bf16.mxu0 0
        %1545 = vmatpush1.bf16.msra.mxu0 %v1542
        %1546 = vmatprep.subr.bf16.mxu0 0
        %1547 = vmatpush1.bf16.msra.mxu0 0
        %1548 = vmatprep.subr.bf16.mxu0 0
        %1549 = vmatpush1.bf16.msra.mxu0 0
        %1550 = vmatprep.subr.bf16.mxu0 0
        %1551 = vmatpush1.bf16.msra.mxu0 0
        %1552 = vmatprep.subr.bf16.mxu0 0
        %1553 = vmatpush1.bf16.msra.mxu0 0
        %1554 = vmatprep.subr.bf16.mxu0 0
        %1555 = vmatpush1.bf16.msra.mxu0 0
        %1556 = vmatprep.subr.bf16.mxu0 0
        %1557 = vmatpush1.bf16.msra.mxu0 0
        %1558 = vmatprep.subr.bf16.mxu0 0
        %1559 = vmatpush1.bf16.msra.mxu0 0
        %1560 = vmatprep.subr.bf16.mxu0 0
        %1561 = vmatpush1.bf16.msra.mxu0 0
        %1562 = vmatprep.subr.bf16.mxu0 0
        %1563 = vmatpush1.bf16.msra.mxu0 0
        %1564 = vmatprep.subr.bf16.mxu0 0
        %1565 = vmatpush1.bf16.msra.mxu0 0
        %1566 = vmatprep.subr.bf16.mxu0 0
        %1567 = vmatpush1.bf16.msra.mxu0 0
        %1568 = vmatprep.subr.bf16.mxu0 0
        %1569 = vmatpush1.bf16.msra.mxu0 0
        %1570 = vmatprep.subr.bf16.mxu0 0
        %1571 = vmatpush1.bf16.msra.mxu0 0
        %1572 = vmatprep.subr.bf16.mxu0 0
        %1573 = vmatpush1.bf16.msra.mxu0 0
        %1574 = vmatprep.subr.bf16.mxu0 0
        %1575 = vmatpush1.bf16.msra.mxu0 0
        %1576 = vmatprep.mubr.bf16.mxu0 0
        %1577 = vmatmul.mubr.bf16.gmra.mrb[0].mxu0 %v1539
        %v1578 = vpop.f32.mrb[0].mxu0
        %v1579 = vadd.f32 0.0, %v1578
        %v1580 = vpop.f32.mrb[0].mxu0
        %v1581 = vpop.f32.mrb[0].mxu0
        %v1582 = vpop.f32.mrb[0].mxu0
        %1583 = vdwg.mxu0
        %v1584 = vsel %vm358, %v1441, 0.0
        %v1585 = vsel %vm358, %v1487, 0.0
        %v1586 = vadd.f32 %v1584, %v1585
        %v1587 = vsel %vm358, %v1533, 0.0
        %v1588 = vadd.f32 %v1586, %v1587
        %v1589 = vsel %vm358, %v1579, 0.0
        %v1590 = vadd.f32 %v1588, %v1589
        %v1591 = vadd.f32 %v356, %v1590
        %v1592 = vlaneseq
        %v1593 = vshrl.u32 %v1592, 7
        %v1594 = vsub.s32 4, %v1593
        %v1595 = vrot.slane %v357, %v1594
        %v1596 = vadd.f32 %v1591, %v1595
        %v1597 = vsel %vm358, %v1596, 0.0
        %1598 = vadd.xlane.f32.xlu0 %v1597
        %v1599 = vpop.xlane.xlu0 %1598
        %v1600 = vmul.f32 %v1599, %v362
        %v1601 = vsub.f32 %v1596, %v1600
        %v1602 = vmul.f32 %v1601, %v1601
        %v1603 = vsel %vm358, %v1602, 0.0
        %1604 = vadd.xlane.f32.xlu0 %v1603
        %v1605 = vpop.xlane.xlu0 %1604
        %v1606 = vmul.f32 %v1605, %v362
        %v1607 = vadd.f32 %v1606, 1e-05
        %v1608 = vrsqrt.pop %v1607
        %v1609 = vmul.f32 %v1601, %v1608
        %v1610 = vlaneseq
        %v1611 = vshrl.u32 %v1610, 7
        %v1612 = vsub.s32 2, %v1611
        %v1613 = vrot.slane %v357, %v1612
        %v1614 = vmul.f32 %v1609, %v1613
        %v1615 = vlaneseq
        %v1616 = vshrl.u32 %v1615, 7
        %v1617 = vsub.s32 3, %v1616
        %v1618 = vrot.slane %v357, %v1617
        %v1619 = vadd.f32 %v1614, %v1618
        %v1620 = vpack.c.bf16 %v1619, %v1619
        %v1621 = vld [vmem:[%s7] sm:$0xf]
        %v1622 = vld [vmem:[%s7 + $0x4] sm:$0xf]
        %v1623 = vld [vmem:[%s7 + $0x8] sm:$0xf]
        %v1624 = vld [vmem:[%s7 + $0xc] sm:$0xf]
        %v1625 = vlaneseq
        %v1626 = vshrl.u32 %v1625, 7
        %v1627 = vsub.s32 5, %v1626
        %v1628 = vrot.slane %v357, %v1627
        %v1633 = vunpack.c.l.b16 %v1621
        %v1634 = vunpack.c.l.b16 %v1622
        %v1635 = vunpack.c.l.b16 %v1623
        %v1636 = vunpack.c.l.b16 %v1624
        %v1637 = vpack.c.b16 %v1634, %v1633
        %v1638 = vpack.c.b16 %v1636, %v1635
        %v1642 = vsel %vm358, %v1620, 0
        %1644 = vmatprep.subr.bf16.mxu0 0
        %1645 = vmatpush1.bf16.msra.mxu0 %v1637
        %1646 = vmatprep.subr.bf16.mxu0 0
        %1647 = vmatpush1.bf16.msra.mxu0 %v1638
        %1648 = vmatprep.subr.bf16.mxu0 0
        %1649 = vmatpush1.bf16.msra.mxu0 0
        %1650 = vmatprep.subr.bf16.mxu0 0
        %1651 = vmatpush1.bf16.msra.mxu0 0
        %1652 = vmatprep.subr.bf16.mxu0 0
        %1653 = vmatpush1.bf16.msra.mxu0 0
        %1654 = vmatprep.subr.bf16.mxu0 0
        %1655 = vmatpush1.bf16.msra.mxu0 0
        %1656 = vmatprep.subr.bf16.mxu0 0
        %1657 = vmatpush1.bf16.msra.mxu0 0
        %1658 = vmatprep.subr.bf16.mxu0 0
        %1659 = vmatpush1.bf16.msra.mxu0 0
        %1660 = vmatprep.subr.bf16.mxu0 0
        %1661 = vmatpush1.bf16.msra.mxu0 0
        %1662 = vmatprep.subr.bf16.mxu0 0
        %1663 = vmatpush1.bf16.msra.mxu0 0
        %1664 = vmatprep.subr.bf16.mxu0 0
        %1665 = vmatpush1.bf16.msra.mxu0 0
        %1666 = vmatprep.subr.bf16.mxu0 0
        %1667 = vmatpush1.bf16.msra.mxu0 0
        %1668 = vmatprep.subr.bf16.mxu0 0
        %1669 = vmatpush1.bf16.msra.mxu0 0
        %1670 = vmatprep.subr.bf16.mxu0 0
        %1671 = vmatpush1.bf16.msra.mxu0 0
        %1672 = vmatprep.subr.bf16.mxu0 0
        %1673 = vmatpush1.bf16.msra.mxu0 0
        %1674 = vmatprep.subr.bf16.mxu0 0
        %1675 = vmatpush1.bf16.msra.mxu0 0
        %1676 = vmatprep.mubr.bf16.mxu0 0
        %1677 = vmatmul.mubr.bf16.gmra.mrb[0].mxu0 %v1642
        %v1678 = vpop.f32.mrb[0].mxu0
        %v1679 = vadd.f32 %v1628, %v1678
        %v1680 = vpop.f32.mrb[0].mxu0
        %v1681 = vpop.f32.mrb[0].mxu0
        %v1682 = vpop.f32.mrb[0].mxu0
        %1683 = vdwg.mxu0
        %v1684 = vmul.f32 %v1679, 0.5
        %v1685 = vmul.f32 %v1679, 0.70710677
        %v1686 = verf.f32.pop %v1685
        %v1687 = vadd.f32 %v1686, 1.0
        %v1688 = vmul.f32 %v1684, %v1687
        %v1689 = vpack.c.bf16 %v1688, %v1688
        %v1690 = vld [vmem:[%s8] sm:$0xf]
        %v1691 = vld [vmem:[%s8 + $0x4] sm:$0xf]
        %v1692 = vld [vmem:[%s8 + $0x8] sm:$0xf]
        %v1693 = vld [vmem:[%s8 + $0xc] sm:$0xf]
        %v1694 = vld [vmem:[%s8 + $0x10] sm:$0xf]
        %v1695 = vld [vmem:[%s8 + $0x14] sm:$0xf]
        %v1696 = vld [vmem:[%s8 + $0x18] sm:$0xf]
        %v1697 = vld [vmem:[%s8 + $0x1c] sm:$0xf]
        %v1698 = vld [vmem:[%s8 + $0x20] sm:$0xf]
        %v1699 = vld [vmem:[%s8 + $0x24] sm:$0xf]
        %v1700 = vld [vmem:[%s8 + $0x28] sm:$0xf]
        %v1701 = vld [vmem:[%s8 + $0x2c] sm:$0xf]
        %v1702 = vld [vmem:[%s8 + $0x30] sm:$0xf]
        %v1703 = vld [vmem:[%s8 + $0x34] sm:$0xf]
        %v1704 = vld [vmem:[%s8 + $0x38] sm:$0xf]
        %v1705 = vld [vmem:[%s8 + $0x3c] sm:$0xf]
        %v1706 = vlaneseq
        %v1707 = vshrl.u32 %v1706, 7
        %v1708 = vsub.s32 6, %v1707
        %v1709 = vrot.slane %v357, %v1708
        %v1726 = vunpack.c.l.b16 %v1690
        %v1727 = vunpack.c.l.b16 %v1691
        %v1728 = vunpack.c.l.b16 %v1692
        %v1729 = vunpack.c.l.b16 %v1693
        %v1730 = vunpack.c.l.b16 %v1694
        %v1731 = vunpack.c.l.b16 %v1695
        %v1732 = vunpack.c.l.b16 %v1696
        %v1733 = vunpack.c.l.b16 %v1697
        %v1734 = vunpack.c.l.b16 %v1698
        %v1735 = vunpack.c.l.b16 %v1699
        %v1736 = vunpack.c.l.b16 %v1700
        %v1737 = vunpack.c.l.b16 %v1701
        %v1738 = vunpack.c.l.b16 %v1702
        %v1739 = vunpack.c.l.b16 %v1703
        %v1740 = vunpack.c.l.b16 %v1704
        %v1741 = vunpack.c.l.b16 %v1705
        %v1742 = vpack.c.b16 %v1727, %v1726
        %v1743 = vpack.c.b16 %v1729, %v1728
        %v1744 = vpack.c.b16 %v1731, %v1730
        %v1745 = vpack.c.b16 %v1733, %v1732
        %v1746 = vpack.c.b16 %v1735, %v1734
        %v1747 = vpack.c.b16 %v1737, %v1736
        %v1748 = vpack.c.b16 %v1739, %v1738
        %v1749 = vpack.c.b16 %v1741, %v1740
        %1758 = vmatprep.subr.bf16.mxu0 0
        %1759 = vmatpush1.bf16.msra.mxu0 %v1742
        %1760 = vmatprep.subr.bf16.mxu0 0
        %1761 = vmatpush1.bf16.msra.mxu0 %v1743
        %1762 = vmatprep.subr.bf16.mxu0 0
        %1763 = vmatpush1.bf16.msra.mxu0 %v1744
        %1764 = vmatprep.subr.bf16.mxu0 0
        %1765 = vmatpush1.bf16.msra.mxu0 %v1745
        %1766 = vmatprep.subr.bf16.mxu0 0
        %1767 = vmatpush1.bf16.msra.mxu0 %v1746
        %1768 = vmatprep.subr.bf16.mxu0 0
        %1769 = vmatpush1.bf16.msra.mxu0 %v1747
        %1770 = vmatprep.subr.bf16.mxu0 0
        %1771 = vmatpush1.bf16.msra.mxu0 %v1748
        %1772 = vmatprep.subr.bf16.mxu0 0
        %1773 = vmatpush1.bf16.msra.mxu0 %v1749
        %1774 = vmatprep.subr.bf16.mxu0 0
        %1775 = vmatpush1.bf16.msra.mxu0 0
        %1776 = vmatprep.subr.bf16.mxu0 0
        %1777 = vmatpush1.bf16.msra.mxu0 0
        %1778 = vmatprep.subr.bf16.mxu0 0
        %1779 = vmatpush1.bf16.msra.mxu0 0
        %1780 = vmatprep.subr.bf16.mxu0 0
        %1781 = vmatpush1.bf16.msra.mxu0 0
        %1782 = vmatprep.subr.bf16.mxu0 0
        %1783 = vmatpush1.bf16.msra.mxu0 0
        %1784 = vmatprep.subr.bf16.mxu0 0
        %1785 = vmatpush1.bf16.msra.mxu0 0
        %1786 = vmatprep.subr.bf16.mxu0 0
        %1787 = vmatpush1.bf16.msra.mxu0 0
        %1788 = vmatprep.subr.bf16.mxu0 0
        %1789 = vmatpush1.bf16.msra.mxu0 0
        %1790 = vmatprep.mubr.bf16.mxu0 0
        %1791 = vmatmul.mubr.bf16.gmra.mrb[0].mxu0 %v1689
        %v1792 = vpop.f32.mrb[0].mxu0
        %v1793 = vadd.f32 %v1709, %v1792
        %v1794 = vpop.f32.mrb[0].mxu0
        %v1795 = vpop.f32.mrb[0].mxu0
        %v1796 = vpop.f32.mrb[0].mxu0
        %1797 = vdwg.mxu0
        %v1798 = vadd.f32 %v1596, %v1793
        %1799 = vst.msk [vmem:[%s350] sm:$0xff] %vm358, %v1798
        %s1800 = sand.u32 %s247, 1
        %s1801 = scalar_lea.sflag [#allocation3], %s1800
        %s1802 = sand.u32 %s247, 1
        %s1803 = smul.addr %s1802, 8
        %s1804 = scalar_lea.vmem [#allocation2], %s1803
        // Predicated region
        $region61: #{tpu_custom_call.1} parent=59 // pred_check
          %p1805 = pneg %p257
        $region62: #{tpu_custom_call.1} parent=59 // pred_check_branch
          %1807 = sbr.rel (%p1805) target = $region64
        $region63: #{tpu_custom_call.1} parent=59 // pred_region
          %s1809 = ssub.s32 128, 128
          %1810 = vsyncadd %s1801, %s1809
          %s1811 = smul.addr %s24, 128
          %s1812 = scalar_lea.hbm %s10, %s1811
          %s1814 = sshll.u32 %s1804, 4
          %s1815 = int_to_ptr.vmem [resolvable:$true] %s1814
          %1817 = dma.vmem_to_hbm [thread:$0]  %s1815, 128, %s1812, %s1801
        $region64: #{tpu_custom_call.1} parent=59 // pred_fallthru
          _
      $region60: #{tpu_custom_call.1} parent=5 // pred_fallthru
        _
      %p1818 = scmp.le.s32.totalorder 2, %s19
      // Predicated region
      $region65: #{tpu_custom_call.1} parent=5 // pred_check
        %p1819 = pneg %p1818
      $region66: #{tpu_custom_call.1} parent=5 // pred_check_branch
        %1821 = sbr.rel (%p1819) target = $region68
      $region67: #{tpu_custom_call.1} parent=5 // pred_region
        %s1822 = ssub.s32 %s19, 2
        // Predicated region
        $region69: #{tpu_custom_call.1} parent=67 // pred_check
          %p1823 = pneg %p263
        $region70: #{tpu_custom_call.1} parent=67 // pred_check_branch
          %1825 = sbr.rel (%p1823) target = $region72
        $region71: #{tpu_custom_call.1} parent=67 // pred_region
          %s1826 = sand.u32 %s248, 1
          %s1827 = scalar_lea.sflag [#allocation3], %s1826
          %s1828 = sand.u32 %s248, 1
          %s1829 = smul.addr %s1828, 8
          %s1830 = scalar_lea.vmem [#allocation2], %s1829
          %1831 = dma.done %s1827, 128
        $region72: #{tpu_custom_call.1} parent=67 // pred_fallthru
          _
      $region68: #{tpu_custom_call.1} parent=5 // pred_fallthru
        _
    $region6: #{tpu_custom_call.1} parent=1 // loop_footer
      %s23 = sadd.s32 1, %s19
    $region7: #{tpu_custom_call.1} parent=1 // loop_footer_branch
      %18 = sbr.rel target = $region3
    $region8: #{tpu_custom_call.1} parent=1 // loop_exit
      _
    %1832 = vsyncpa [#allocation3], 1
    %s1833 = scalar_lea.sflag [#allocation3], 1
    %1834 = vsyncpa %s1833, 1

</llo_original>
